<compile_context>
chip_gen: v7x
topology: tpu7x:2x2x1
jax: 0.10.0
libtpu: 0.0.40
codegen_flags: <defaults>
</compile_context>

<pallas_src>
import math

import jax
import jax.numpy as jnp
from jax.experimental import pallas as pl
from jax.experimental.pallas import tpu as pltpu


# ------------------------------ fused MHA kernel ------------------------------

def _make_mha_kernel(n_head, has_mask, matmul_dtype):
    """One grid step == (one batch element, one query tile); all heads fused."""

    def kernel(*refs):
        if has_mask:
            (q_ref, k_ref, v_ref, m_ref,
             wq_ref, wk_ref, wv_ref, wc_ref,
             bq_ref, bk_ref, bv_ref, bc_ref, o_ref) = refs
        else:
            (q_ref, k_ref, v_ref,
             wq_ref, wk_ref, wv_ref, wc_ref,
             bq_ref, bk_ref, bv_ref, bc_ref, o_ref) = refs

        tq, d_model = q_ref.shape[1], q_ref.shape[2]
        lk = k_ref.shape[1]
        dh = d_model // n_head

        # Activations arrive f32 over the DMA; cast to the matmul dtype in-VMEM
        # (no extra HBM round trip).  Weights were cast once in the wrapper.
        xq = q_ref[0].astype(matmul_dtype)     # (tq, D)
        xk = k_ref[0].astype(matmul_dtype)     # (L,  D)
        xv = v_ref[0].astype(matmul_dtype)     # (L,  D)

        # QKV projections on the MXU, f32 accumulation, f32 bias add.
        qp = jnp.dot(xq, wq_ref[...], preferred_element_type=jnp.float32) + bq_ref[...]
        kp = jnp.dot(xk, wk_ref[...], preferred_element_type=jnp.float32) + bk_ref[...]
        vp = jnp.dot(xv, wv_ref[...], preferred_element_type=jnp.float32) + bv_ref[...]

        # Fold the attention scale into Q (tq*D elements instead of H*tq*L scores).
        qp = qp * jnp.float32(1.0 / math.sqrt(dh))

        # Split heads -> head-batched (H, rows, dh) operands: a single reshape +
        # leading-axis swap per tensor instead of H narrow column slices.
        qh = jnp.swapaxes(qp.reshape(tq, n_head, dh), 0, 1).astype(matmul_dtype)
        kh = jnp.swapaxes(kp.reshape(lk, n_head, dh), 0, 1).astype(matmul_dtype)
        vh = jnp.swapaxes(vp.reshape(lk, n_head, dh), 0, 1).astype(matmul_dtype)

        # Scores: one head-batched matmul, (H, tq, L), f32 accumulation.
        s = jnp.einsum("hqd,hkd->hqk", qh, kh, preferred_element_type=jnp.float32)

        if has_mask:
            # int8 compare done once per grid step; one select broadcast over heads
            # (exact masked_fill(-10000) semantics of the reference module).
            masked = m_ref[0] == 0                                     # (tq, L)
            s = jnp.where(masked[None, :, :], jnp.float32(-10000.0), s)

        # Numerically-stable softmax over keys, all in f32.
        s = s - jnp.max(s, axis=-1, keepdims=True)
        p = jnp.exp(s)
        p = p * pl.reciprocal(jnp.sum(p, axis=-1, keepdims=True), approx=True)

        # PV: head-batched matmul -> (H, tq, dh), f32 accumulation.
        pv = jnp.einsum("hqk,hkd->hqd", p.astype(matmul_dtype), vh,
                        preferred_element_type=jnp.float32)

        # Output projection folded over (head, dh): wc_ref is (H, dh, D).  No explicit
        # head concat; the head axis is reduced with a cheap sum over the leading dim.
        yh = jnp.einsum("hqd,hde->hqe", pv.astype(matmul_dtype), wc_ref[...],
                        preferred_element_type=jnp.float32)            # (H, tq, D)
        y = jnp.sum(yh, axis=0) + bc_ref[...]                          # (tq, D)
        o_ref[0] = y.astype(o_ref.dtype)

    return kernel


def _vmem_limit_bytes():
    """~75% of the chip's VMEM (capped); conservative fallback if unknown."""
    try:
        cap = int(pltpu.get_tpu_info().vmem_capacity_bytes)
    except Exception:
        return 48 * 1024 * 1024          # safe on every chip generation (<= v7x 64 MiB)
    return min(cap * 3 // 4, 100 * 1024 * 1024)


def multi_head_attention(q, k, v, params, n_head, mask=None, *,
                         matmul_dtype=jnp.bfloat16, q_tile=256):
    """Forward pass of MultiHeadAttention. q/k/v: (B, L, d_model) float32.

    Note: for full MXU/lane efficiency, production configs should use
    d_model % 128 == 0 (ideally d_head % 128 == 0); smaller values work but pad
    the MXU and use lane-masked stores.
    """
    B, Lq, D = q.shape
    Lk = k.shape[1]
    assert D % n_head == 0
    dh = D // n_head
    assert k.shape == (B, Lk, D) and v.shape == (B, Lk, D)

    # Query tiling: caps the (H, tq, Lk) score slab in VMEM and gives the grid more
    # parallel steps (helps v7x megacore when B is small).
    if Lq % q_tile == 0:
        tq = q_tile
    else:
        tq = Lq  # TODO(synk): pad/mask ragged query tiles instead of one big tile.
    n_qt = Lq // tq

    # Weights cast to the matmul dtype once (halves resident VMEM + weight DMA);
    # biases stay f32 (added to f32 accumulators).  w_concat is pre-reshaped to
    # (H, dh, D) so the kernel folds the head concat into the output projection.
    wq = params["w_q"].astype(matmul_dtype)
    wk = params["w_k"].astype(matmul_dtype)
    wv = params["w_v"].astype(matmul_dtype)
    wc = params["w_concat"].reshape(n_head, dh, D).astype(matmul_dtype)
    bq = params["b_q"].reshape(1, D).astype(jnp.float32)
    bk = params["b_k"].reshape(1, D).astype(jnp.float32)
    bv = params["b_v"].reshape(1, D).astype(jnp.float32)
    bc = params["b_concat"].reshape(1, D).astype(jnp.float32)

    q_spec = pl.BlockSpec((1, tq, D), lambda b, i: (b, i, 0))
    kv_spec = pl.BlockSpec((1, Lk, D), lambda b, i: (b, 0, 0))     # constant over q tiles
    w_spec = pl.BlockSpec((D, D), lambda b, i: (0, 0))             # VMEM-resident
    wc_spec = pl.BlockSpec((n_head, dh, D), lambda b, i: (0, 0, 0))
    b_spec = pl.BlockSpec((1, D), lambda b, i: (0, 0))
    out_spec = pl.BlockSpec((1, tq, D), lambda b, i: (b, i, 0))

    inputs = [q, k, v]
    in_specs = [q_spec, kv_spec, kv_spec]

    has_mask = mask is not None
    if has_mask:
        m = jnp.asarray(mask)
        if m.ndim == 4:
            # Per-head masks with distinct heads are not supported by the fused kernel.
            assert m.shape[1] == 1, "mask head dimension must be 1 (shared across heads)"
            m = m[:, 0]
        elif m.ndim == 2:
            m = m[None]
        assert m.ndim == 3 and m.shape[1:] == (Lq, Lk)
        assert m.shape[0] in (1, B)
        shared = m.shape[0] == 1          # shared mask: never replicated across batch
        m = m.astype(jnp.int8)            # minimal DMA footprint
        if shared:
            m_spec = pl.BlockSpec((1, tq, Lk), lambda b, i: (0, i, 0))
        else:
            m_spec = pl.BlockSpec((1, tq, Lk), lambda b, i: (b, i, 0))
        inputs.append(m)
        in_specs.append(m_spec)

    inputs += [wq, wk, wv, wc, bq, bk, bv, bc]
    in_specs += [w_spec, w_spec, w_spec, wc_spec, b_spec, b_spec, b_spec, b_spec]

    kernel = _make_mha_kernel(n_head, has_mask, matmul_dtype)
    return pl.pallas_call(
        kernel,
        out_shape=jax.ShapeDtypeStruct((B, Lq, D), q.dtype),
        grid=(B, n_qt),
        in_specs=in_specs,
        out_specs=out_spec,
        compiler_params=pltpu.CompilerParams(
            # Both axes are independent -> either can be sharded across v7x's 2 TCs.
            dimension_semantics=("parallel", "parallel"),
            vmem_limit_bytes=_vmem_limit_bytes(),
        ),
    )(*inputs)


# ------------------------------ params & reference ------------------------------

def init_mha_params(key, d_model):
    """Deterministic init matching the nn.Linear shapes (d_model x d_model + bias)."""
    bound = 1.0 / math.sqrt(d_model)
    names = ["q", "k", "v", "concat"]
    keys = jax.random.split(key, 2 * len(names))
    params = {}
    for i, name in enumerate(names):
        params["w_" + name] = jax.random.uniform(
            keys[2 * i], (d_model, d_model), jnp.float32, -bound, bound)
        params["b_" + name] = jax.random.uniform(
            keys[2 * i + 1], (d_model,), jnp.float32, -bound, bound)
    return params


def reference_mha(q, k, v, params, n_head, mask=None):
    """Plain-JAX reference mirroring the PyTorch module (for self-check)."""
    B, L, D = q.shape
    dh = D // n_head
    qp = q @ params["w_q"] + params["b_q"]
    kp = k @ params["w_k"] + params["b_k"]
    vp = v @ params["w_v"] + params["b_v"]

    def split(t):
        return t.reshape(B, L, n_head, dh).transpose(0, 2, 1, 3)

    qh, kh, vh = split(qp), split(kp), split(vp)
    score = jnp.einsum("bhld,bhmd->bhlm", qh, kh) / math.sqrt(dh)
    if mask is not None:
        score = jnp.where(mask == 0, -10000.0, score)
    p = jax.nn.softmax(score, axis=-1)
    out = jnp.einsum("bhlm,bhmd->bhld", p, vh)
    out = out.transpose(0, 2, 1, 3).reshape(B, L, D)
    return out @ params["w_concat"] + params["b_concat"]


# ------------------------------------ main ------------------------------------

if __name__ == "__main__":
    B, L, d_model, n_head = 2, 8, 32, 4

    key = jax.random.PRNGKey(0)
    kp_, kq, kk, kv = jax.random.split(key, 4)

    params = init_mha_params(kp_, d_model)
    q = jax.random.normal(kq, (B, L, d_model), jnp.float32)
    k = jax.random.normal(kk, (B, L, d_model), jnp.float32)
    v = jax.random.normal(kv, (B, L, d_model), jnp.float32)

    ref = reference_mha(q, k, v, params, n_head, mask=None)
    causal = jnp.tril(jnp.ones((L, L), jnp.int32)).reshape(1, 1, L, L)     # shared mask
    causal_b = jnp.broadcast_to(causal, (B, 1, L, L))                      # per-batch mask
    ref_m = reference_mha(q, k, v, params, n_head, mask=causal)

    # 1) f32 matmul path, no mask — tight structural check.
    out32 = jax.block_until_ready(
        multi_head_attention(q, k, v, params, n_head, mask=None,
                             matmul_dtype=jnp.float32))
    assert out32.shape == (B, L, d_model)
    assert jnp.allclose(out32, ref, atol=5e-3, rtol=5e-3), \
        float(jnp.max(jnp.abs(out32 - ref)))

    # 2) f32 matmul path with a batch-shared causal mask (resident (1,L,L) int8 block).
    out32_m = jax.block_until_ready(
        multi_head_attention(q, k, v, params, n_head, mask=causal,
                             matmul_dtype=jnp.float32))
    assert jnp.allclose(out32_m, ref_m, atol=5e-3, rtol=5e-3), \
        float(jnp.max(jnp.abs(out32_m - ref_m)))

    # 3) default bf16 matmul path (production path on v6e/v7x), no mask.
    out_bf = jax.block_until_ready(
        multi_head_attention(q, k, v, params, n_head, mask=None))
    assert jnp.allclose(out_bf, ref, atol=5e-2, rtol=5e-2), \
        float(jnp.max(jnp.abs(out_bf - ref)))

    # 4) bf16 matmul path with a per-batch causal mask.
    out_bf_m = jax.block_until_ready(
        multi_head_attention(q, k, v, params, n_head, mask=causal_b))
    assert jnp.allclose(out_bf_m, ref_m, atol=5e-2, rtol=5e-2), \
        float(jnp.max(jnp.abs(out_bf_m - ref_m)))

    print("KERNEL_OK")
</pallas_src>

<mosaic_0001>
module attributes {stable_mosaic.version = 11 : i64} {
  func.func @kernel(%arg0: i32, %arg1: i32, %arg2: memref<1x8x32xf32, #tpu.memory_space<vmem>>, %arg3: memref<1x8x32xf32, #tpu.memory_space<vmem>>, %arg4: memref<1x8x32xf32, #tpu.memory_space<vmem>>, %arg5: memref<32x32xf32, #tpu.memory_space<vmem>>, %arg6: memref<32x32xf32, #tpu.memory_space<vmem>>, %arg7: memref<32x32xf32, #tpu.memory_space<vmem>>, %arg8: memref<4x8x32xf32, #tpu.memory_space<vmem>>, %arg9: memref<1x32xf32, #tpu.memory_space<vmem>>, %arg10: memref<1x32xf32, #tpu.memory_space<vmem>>, %arg11: memref<1x32xf32, #tpu.memory_space<vmem>>, %arg12: memref<1x32xf32, #tpu.memory_space<vmem>>, %arg13: memref<1x8x32xf32, #tpu.memory_space<vmem>>) attributes {dimension_semantics = [#tpu.dimension_semantics<parallel>, #tpu.dimension_semantics<parallel>], iteration_bounds = array<i64: 2, 1>, scalar_prefetch = 0 : i64, scratch_operands = 0 : i64, tpu.core_type = #tpu.core_type<tc>, window_params = [{transform_indices = @transform_0, window_bounds = array<i64: 1, 8, 32>}, {transform_indices = @transform_1, window_bounds = array<i64: 1, 8, 32>}, {transform_indices = @transform_2, window_bounds = array<i64: 1, 8, 32>}, {pipeline_mode = #tpu.pipeline_mode<synchronous>, transform_indices = @transform_3, window_bounds = array<i64: 32, 32>}, {pipeline_mode = #tpu.pipeline_mode<synchronous>, transform_indices = @transform_4, window_bounds = array<i64: 32, 32>}, {pipeline_mode = #tpu.pipeline_mode<synchronous>, transform_indices = @transform_5, window_bounds = array<i64: 32, 32>}, {pipeline_mode = #tpu.pipeline_mode<synchronous>, transform_indices = @transform_6, window_bounds = array<i64: 4, 8, 32>}, {pipeline_mode = #tpu.pipeline_mode<synchronous>, transform_indices = @transform_7, window_bounds = array<i64: 1, 32>}, {pipeline_mode = #tpu.pipeline_mode<synchronous>, transform_indices = @transform_8, window_bounds = array<i64: 1, 32>}, {pipeline_mode = #tpu.pipeline_mode<synchronous>, transform_indices = @transform_9, window_bounds = array<i64: 1, 32>}, {pipeline_mode = #tpu.pipeline_mode<synchronous>, transform_indices = @transform_10, window_bounds = array<i64: 1, 32>}, {transform_indices = @transform_11, window_bounds = array<i64: 1, 8, 32>}]} {
    %c0 = arith.constant 0 : index
    %c0_0 = arith.constant 0 : index
    %c0_1 = arith.constant 0 : index
    %0 = vector.load %arg2[%c0, %c0_0, %c0_1] : memref<1x8x32xf32, #tpu.memory_space<vmem>>, vector<1x8x32xf32>
    %1 = vector.shape_cast %0 : vector<1x8x32xf32> to vector<8x32xf32>
    %c0_2 = arith.constant 0 : index
    %c0_3 = arith.constant 0 : index
    %c0_4 = arith.constant 0 : index
    %2 = vector.load %arg3[%c0_2, %c0_3, %c0_4] : memref<1x8x32xf32, #tpu.memory_space<vmem>>, vector<1x8x32xf32>
    %3 = vector.shape_cast %2 : vector<1x8x32xf32> to vector<8x32xf32>
    %c0_5 = arith.constant 0 : index
    %c0_6 = arith.constant 0 : index
    %c0_7 = arith.constant 0 : index
    %4 = vector.load %arg4[%c0_5, %c0_6, %c0_7] : memref<1x8x32xf32, #tpu.memory_space<vmem>>, vector<1x8x32xf32>
    %5 = vector.shape_cast %4 : vector<1x8x32xf32> to vector<8x32xf32>
    %c0_8 = arith.constant 0 : index
    %c0_9 = arith.constant 0 : index
    %6 = vector.load %arg5[%c0_8, %c0_9] : memref<32x32xf32, #tpu.memory_space<vmem>>, vector<32x32xf32>
    %cst = arith.constant dense<0.000000e+00> : vector<8x32xf32>
    %7 = tpu.matmul %1, %6, %cst {dimension_numbers = #tpu.dot_dimension_numbers<[1], [0], [0], [1], [0, 0, 1, 1], [], []>} : vector<8x32xf32>, vector<32x32xf32>, vector<8x32xf32> -> vector<8x32xf32>
    %c0_10 = arith.constant 0 : index
    %c0_11 = arith.constant 0 : index
    %8 = vector.load %arg9[%c0_10, %c0_11] : memref<1x32xf32, #tpu.memory_space<vmem>>, vector<1x32xf32>
    %9 = vector.broadcast %8 : vector<1x32xf32> to vector<8x32xf32>
    %10 = arith.addf %7, %9 : vector<8x32xf32>
    %c0_12 = arith.constant 0 : index
    %c0_13 = arith.constant 0 : index
    %11 = vector.load %arg6[%c0_12, %c0_13] : memref<32x32xf32, #tpu.memory_space<vmem>>, vector<32x32xf32>
    %cst_14 = arith.constant dense<0.000000e+00> : vector<8x32xf32>
    %12 = tpu.matmul %3, %11, %cst_14 {dimension_numbers = #tpu.dot_dimension_numbers<[1], [0], [0], [1], [0, 0, 1, 1], [], []>} : vector<8x32xf32>, vector<32x32xf32>, vector<8x32xf32> -> vector<8x32xf32>
    %c0_15 = arith.constant 0 : index
    %c0_16 = arith.constant 0 : index
    %13 = vector.load %arg10[%c0_15, %c0_16] : memref<1x32xf32, #tpu.memory_space<vmem>>, vector<1x32xf32>
    %14 = vector.broadcast %13 : vector<1x32xf32> to vector<8x32xf32>
    %15 = arith.addf %12, %14 : vector<8x32xf32>
    %c0_17 = arith.constant 0 : index
    %c0_18 = arith.constant 0 : index
    %16 = vector.load %arg7[%c0_17, %c0_18] : memref<32x32xf32, #tpu.memory_space<vmem>>, vector<32x32xf32>
    %cst_19 = arith.constant dense<0.000000e+00> : vector<8x32xf32>
    %17 = tpu.matmul %5, %16, %cst_19 {dimension_numbers = #tpu.dot_dimension_numbers<[1], [0], [0], [1], [0, 0, 1, 1], [], []>} : vector<8x32xf32>, vector<32x32xf32>, vector<8x32xf32> -> vector<8x32xf32>
    %c0_20 = arith.constant 0 : index
    %c0_21 = arith.constant 0 : index
    %18 = vector.load %arg11[%c0_20, %c0_21] : memref<1x32xf32, #tpu.memory_space<vmem>>, vector<1x32xf32>
    %19 = vector.broadcast %18 : vector<1x32xf32> to vector<8x32xf32>
    %20 = arith.addf %17, %19 : vector<8x32xf32>
    %cst_22 = arith.constant 0.353553385 : f32
    %21 = vector.broadcast %cst_22 : f32 to vector<8x32xf32>
    %22 = arith.mulf %10, %21 : vector<8x32xf32>
    %23 = vector.shape_cast %22 : vector<8x32xf32> to vector<8x4x8xf32>
    %24 = tpu.transpose %23, [1, 0, 2] : vector<8x4x8xf32> -> vector<4x8x8xf32>
    %25 = vector.shape_cast %15 : vector<8x32xf32> to vector<8x4x8xf32>
    %26 = tpu.transpose %25, [1, 0, 2] : vector<8x4x8xf32> -> vector<4x8x8xf32>
    %27 = vector.shape_cast %20 : vector<8x32xf32> to vector<8x4x8xf32>
    %28 = tpu.transpose %27, [1, 0, 2] : vector<8x4x8xf32> -> vector<4x8x8xf32>
    "tpu.trace_start"() <{level = 10 : i32, message = "hqd,hkd->hqk"}> : () -> ()
    %cst_23 = arith.constant dense<0.000000e+00> : vector<4x8x8xf32>
    %29 = tpu.matmul %24, %26, %cst_23 {dimension_numbers = #tpu.dot_dimension_numbers<[2], [2], [1], [1], [0, 0, 0, 1, 1, 1], [0], [0]>} : vector<4x8x8xf32>, vector<4x8x8xf32>, vector<4x8x8xf32> -> vector<4x8x8xf32>
    "tpu.trace_stop"() : () -> ()
    %cst_24 = arith.constant dense<0xFF800000> : vector<4x8xf32>
    %30 = vector.multi_reduction <maximumf>, %29, %cst_24 [2] : vector<4x8x8xf32> to vector<4x8xf32>
    %31 = vector.shape_cast %30 : vector<4x8xf32> to vector<4x8x1xf32>
    %32 = vector.broadcast %31 : vector<4x8x1xf32> to vector<4x8x8xf32>
    %33 = arith.subf %29, %32 : vector<4x8x8xf32>
    %34 = math.exp %33 : vector<4x8x8xf32>
    %cst_25 = arith.constant dense<0.000000e+00> : vector<4x8xf32>
    %35 = vector.multi_reduction <add>, %34, %cst_25 [2] : vector<4x8x8xf32> to vector<4x8xf32>
    %36 = vector.shape_cast %35 : vector<4x8xf32> to vector<4x8x1xf32>
    %37 = tpu.reciprocal %36 {approx = true} : vector<4x8x1xf32> -> vector<4x8x1xf32>
    %38 = vector.broadcast %37 : vector<4x8x1xf32> to vector<4x8x8xf32>
    %39 = arith.mulf %34, %38 : vector<4x8x8xf32>
    "tpu.trace_start"() <{level = 10 : i32, message = "hqk,hkd->hqd"}> : () -> ()
    %cst_26 = arith.constant dense<0.000000e+00> : vector<4x8x8xf32>
    %40 = tpu.matmul %39, %28, %cst_26 {dimension_numbers = #tpu.dot_dimension_numbers<[2], [1], [1], [2], [0, 0, 0, 1, 1, 2], [0], [0]>} : vector<4x8x8xf32>, vector<4x8x8xf32>, vector<4x8x8xf32> -> vector<4x8x8xf32>
    "tpu.trace_stop"() : () -> ()
    %c0_27 = arith.constant 0 : index
    %c0_28 = arith.constant 0 : index
    %c0_29 = arith.constant 0 : index
    %41 = vector.load %arg8[%c0_27, %c0_28, %c0_29] : memref<4x8x32xf32, #tpu.memory_space<vmem>>, vector<4x8x32xf32>
    "tpu.trace_start"() <{level = 10 : i32, message = "hqd,hde->hqe"}> : () -> ()
    %cst_30 = arith.constant dense<0.000000e+00> : vector<4x8x32xf32>
    %42 = tpu.matmul %40, %41, %cst_30 {dimension_numbers = #tpu.dot_dimension_numbers<[2], [1], [1], [2], [0, 0, 0, 1, 1, 2], [0], [0]>} : vector<4x8x8xf32>, vector<4x8x32xf32>, vector<4x8x32xf32> -> vector<4x8x32xf32>
    "tpu.trace_stop"() : () -> ()
    %cst_31 = arith.constant dense<0.000000e+00> : vector<8x32xf32>
    %43 = vector.multi_reduction <add>, %42, %cst_31 [0] : vector<4x8x32xf32> to vector<8x32xf32>
    %c0_32 = arith.constant 0 : index
    %c0_33 = arith.constant 0 : index
    %44 = vector.load %arg12[%c0_32, %c0_33] : memref<1x32xf32, #tpu.memory_space<vmem>>, vector<1x32xf32>
    %45 = vector.broadcast %44 : vector<1x32xf32> to vector<8x32xf32>
    %46 = arith.addf %43, %45 : vector<8x32xf32>
    %c0_34 = arith.constant 0 : index
    %c0_35 = arith.constant 0 : index
    %c0_36 = arith.constant 0 : index
    %47 = vector.load %arg13[%c0_34, %c0_35, %c0_36] : memref<1x8x32xf32, #tpu.memory_space<vmem>>, vector<1x8x32xf32>
    %48 = vector.shape_cast %47 : vector<1x8x32xf32> to vector<8x32xf32>
    %49 = vector.shape_cast %46 : vector<8x32xf32> to vector<1x8x32xf32>
    tpu.vector_store %arg13[%c0_34, %c0_35, %c0_36], %49 {strides = array<i32>} : memref<1x8x32xf32, #tpu.memory_space<vmem>>, vector<1x8x32xf32>,
    return
  }
  func.func @transform_0(%arg0: i32, %arg1: i32) -> (i32, i32, i32) {
    %c0_i32 = arith.constant 0 : i32
    %c0_i32_0 = arith.constant 0 : i32
    return %arg0, %arg1, %c0_i32 : i32, i32, i32
  }
  func.func @transform_1(%arg0: i32, %arg1: i32) -> (i32, i32, i32) {
    %c0_i32 = arith.constant 0 : i32
    %c0_i32_0 = arith.constant 0 : i32
    %c0_i32_1 = arith.constant 0 : i32
    return %arg0, %c0_i32, %c0_i32_0 : i32, i32, i32
  }
  func.func @transform_2(%arg0: i32, %arg1: i32) -> (i32, i32, i32) {
    %c0_i32 = arith.constant 0 : i32
    %c0_i32_0 = arith.constant 0 : i32
    %c0_i32_1 = arith.constant 0 : i32
    return %arg0, %c0_i32, %c0_i32_0 : i32, i32, i32
  }
  func.func @transform_3(%arg0: i32, %arg1: i32) -> (i32, i32) {
    %c0_i32 = arith.constant 0 : i32
    %c0_i32_0 = arith.constant 0 : i32
    %c0_i32_1 = arith.constant 0 : i32
    return %c0_i32, %c0_i32_0 : i32, i32
  }
  func.func @transform_4(%arg0: i32, %arg1: i32) -> (i32, i32) {
    %c0_i32 = arith.constant 0 : i32
    %c0_i32_0 = arith.constant 0 : i32
    %c0_i32_1 = arith.constant 0 : i32
    return %c0_i32, %c0_i32_0 : i32, i32
  }
  func.func @transform_5(%arg0: i32, %arg1: i32) -> (i32, i32) {
    %c0_i32 = arith.constant 0 : i32
    %c0_i32_0 = arith.constant 0 : i32
    %c0_i32_1 = arith.constant 0 : i32
    return %c0_i32, %c0_i32_0 : i32, i32
  }
  func.func @transform_6(%arg0: i32, %arg1: i32) -> (i32, i32, i32) {
    %c0_i32 = arith.constant 0 : i32
    %c0_i32_0 = arith.constant 0 : i32
    %c0_i32_1 = arith.constant 0 : i32
    %c0_i32_2 = arith.constant 0 : i32
    return %c0_i32, %c0_i32_0, %c0_i32_1 : i32, i32, i32
  }
  func.func @transform_7(%arg0: i32, %arg1: i32) -> (i32, i32) {
    %c0_i32 = arith.constant 0 : i32
    %c0_i32_0 = arith.constant 0 : i32
    %c0_i32_1 = arith.constant 0 : i32
    return %c0_i32, %c0_i32_0 : i32, i32
  }
  func.func @transform_8(%arg0: i32, %arg1: i32) -> (i32, i32) {
    %c0_i32 = arith.constant 0 : i32
    %c0_i32_0 = arith.constant 0 : i32
    %c0_i32_1 = arith.constant 0 : i32
    return %c0_i32, %c0_i32_0 : i32, i32
  }
  func.func @transform_9(%arg0: i32, %arg1: i32) -> (i32, i32) {
    %c0_i32 = arith.constant 0 : i32
    %c0_i32_0 = arith.constant 0 : i32
    %c0_i32_1 = arith.constant 0 : i32
    return %c0_i32, %c0_i32_0 : i32, i32
  }
  func.func @transform_10(%arg0: i32, %arg1: i32) -> (i32, i32) {
    %c0_i32 = arith.constant 0 : i32
    %c0_i32_0 = arith.constant 0 : i32
    %c0_i32_1 = arith.constant 0 : i32
    return %c0_i32, %c0_i32_0 : i32, i32
  }
  func.func @transform_11(%arg0: i32, %arg1: i32) -> (i32, i32, i32) {
    %c0_i32 = arith.constant 0 : i32
    %c0_i32_0 = arith.constant 0 : i32
    return %arg0, %arg1, %c0_i32 : i32, i32, i32
  }
}

</mosaic_0001>

<llo_original>
// kernel: tpu_custom_call.1
$region0: #{tpu_custom_call.1}
  #allocation0 [shape = 'u32[]', space=smem, size = 0x4, offset = 0x4, fixed_abs, tag = 'smem constant byte address 0x4 - core index']
  #allocation1 [shape = 'u32[144,128]{1,0:T(1,128)}', space=vmem, size = 0x12000, scoped, tag = 'internal scratch']
  %s0 = inlined_call_operand.hbm [shape: f32[2,8,32], index: 0, kind: input, shape index: {}]
  %s1 = inlined_call_operand.hbm [shape: f32[2,8,32], index: 1, kind: input, shape index: {}]
  %s2 = inlined_call_operand.hbm [shape: f32[2,8,32], index: 2, kind: input, shape index: {}]
  %s3 = inlined_call_operand.hbm [shape: f32[32,32], index: 3, kind: input, shape index: {}]
  %s4 = inlined_call_operand.hbm [shape: f32[32,32], index: 4, kind: input, shape index: {}]
  %s5 = inlined_call_operand.hbm [shape: f32[32,32], index: 5, kind: input, shape index: {}]
  %s6 = inlined_call_operand.hbm [shape: f32[4,8,32], index: 6, kind: input, shape index: {}]
  %s7 = inlined_call_operand.vmem [shape: f32[1,32], index: 7, kind: input, shape index: {}]
  %s8 = inlined_call_operand.vmem [shape: f32[1,32], index: 8, kind: input, shape index: {}]
  %s9 = inlined_call_operand.vmem [shape: f32[1,32], index: 9, kind: input, shape index: {}]
  %s10 = inlined_call_operand.vmem [shape: f32[1,32], index: 10, kind: input, shape index: {}]
  %s11 = inlined_call_operand.hbm [shape: f32[2,8,32], index: 11, kind: output, shape index: {}]
  %s12 = sld [smem:[#allocation0]]
  $region105: #{tpu_custom_call.1} parent=0
    _
  %s14 = ssub.s32 1, %s12
  %s15 = scalar_select 0, %s14, %s12
  $region1: #{tpu_custom_call.1} parent=0
    #allocation2 [shape = 'u8[8192]{0}', space=vmem, size = 0x2000, scoped, tag = 'input window, operand 0']
    #allocation3 [shape = 's32[2]{0}', space=sflag, size = 0x8, scoped, tag = 'scoped memory for tpu_custom_call.1']
    #allocation4 [shape = 's32[2]{0}', space=sflag, size = 0x8, scoped, tag = 'scoped memory for tpu_custom_call.1']
    #allocation5 [shape = 'u8[8192]{0}', space=vmem, size = 0x2000, scoped, tag = 'input window, operand 1']
    #allocation6 [shape = 's32[2]{0}', space=sflag, size = 0x8, scoped, tag = 'scoped memory for tpu_custom_call.1']
    #allocation7 [shape = 'u8[8192]{0}', space=vmem, size = 0x2000, scoped, tag = 'input window, operand 2']
    #allocation8 [shape = 'u8[16384]{0}', space=vmem, size = 0x4000, scoped, tag = 'input window, operand 3, single buffered']
    #allocation9 [shape = 's32[1]{0}', space=sflag, size = 0x4, scoped, tag = 'scoped memory for tpu_custom_call.1']
    #allocation10 [shape = 'u8[16384]{0}', space=vmem, size = 0x4000, scoped, tag = 'input window, operand 4, single buffered']
    #allocation11 [shape = 'u8[16384]{0}', space=vmem, size = 0x4000, scoped, tag = 'input window, operand 5, single buffered']
    #allocation12 [shape = 's32[1]{0}', space=sflag, size = 0x4, scoped, tag = 'scoped memory for tpu_custom_call.1']
    #allocation13 [shape = 'u8[16384]{0}', space=vmem, size = 0x4000, scoped, tag = 'input window, operand 6, single buffered']
    #allocation14 [shape = 'u8[8192]{0}', space=vmem, size = 0x2000, scoped, tag = 'output window, operand 0']
    %16 = vsyncpa [#allocation3], 0
    %s17 = scalar_lea.sflag [#allocation3], 1
    %18 = vsyncpa %s17, 0
    %19 = vsyncpa [#allocation6], 0
    %s20 = scalar_lea.sflag [#allocation6], 1
    %21 = vsyncpa %s20, 0
    %22 = vsyncpa [#allocation9], 0
    %23 = vsyncpa [#allocation12], 0
    %24 = vsyncpa [#allocation4], 0
    %s25 = scalar_lea.sflag [#allocation4], 1
    %26 = vsyncpa %s25, 0
    loop: start=0, step=1, limit=4
    $region2: #{tpu_custom_call.1} parent=1 // loop_pre_header
      _
    $region3: #{tpu_custom_call.1} parent=1 // loop_header
      %s28 = sphi 0, %s32
      %p29 = scmp.ge.s32.totalorder %s28, 4
      %s35 = sphi 0, %s47
      %s36 = sphi 0, %s43
      %s37 = sphi 0, %s35
      %s38 = sphi 0, %s36
      %s39 = sphi 0, %s37
      %s40 = sphi 0, %s38
      %s52 = sphi 0, %s54
      %s55 = sphi 0, %s52
      %s56 = sphi 0, %s55
      %s72 = sphi 0, %s56
      %s78 = sphi 0, %s80
      %s81 = sphi 0, %s78
      %s82 = sphi 0, %s81
      %s98 = sphi 0, %s82
      %s104 = sphi 0, %s106
      %s107 = sphi 0, %s104
      %s108 = sphi 0, %s107
      %s124 = sphi 0, %s108
      %s128 = sphi 0, %s128
      %s130 = sphi 0, %s128
      %s131 = sphi 0, %s130
      %s145 = sphi 0, %s131
      %s149 = sphi 0, %s149
      %s151 = sphi 0, %s149
      %s152 = sphi 0, %s151
      %s166 = sphi 0, %s152
      %s170 = sphi 0, %s170
      %s172 = sphi 0, %s170
      %s173 = sphi 0, %s172
      %s187 = sphi 0, %s173
      %s191 = sphi 0, %s191
      %s193 = sphi 0, %s191
      %s194 = sphi 0, %s193
      %s208 = sphi 0, %s194
      %s212 = sphi 0, %s212
      %s214 = sphi 0, %s212
      %s215 = sphi 0, %s214
      %s229 = sphi 0, %s215
      %s233 = sphi 0, %s233
      %s235 = sphi 0, %s233
      %s236 = sphi 0, %s235
      %s250 = sphi 0, %s236
      %s254 = sphi 0, %s254
      %s256 = sphi 0, %s254
      %s257 = sphi 0, %s256
      %s271 = sphi 0, %s257
      %s275 = sphi 0, %s275
      %s277 = sphi 0, %s275
      %s278 = sphi 0, %s277
      %s292 = sphi 0, %s278
      %s300 = sphi 0, %s302
      %s303 = sphi 0, %s300
      %s304 = sphi 0, %s303
      %s320 = sphi 0, %s304
    $region4: #{tpu_custom_call.1} parent=1 // loop_header_branch
      %31 = sbr.rel (%p29) target = $region8
    $region5: #{tpu_custom_call.1} parent=1 // loop_body
      %s33 = ssub.s32 %s28, 1
      %s34 = ssub.s32 %s28, 2
      %s41 = sadd.s32 1, %s36
      %p42 = scmp.ge.s32.totalorder %s41, 1
      %s43 = scalar_select %p42, 0, %s41
      %s44 = sadd.s32 1, %s35
      %s45 = scalar_select %p42, %s44, %s35
      %p46 = scmp.ge.s32.totalorder %s45, 2
      %s47 = scalar_select %p46, 0, %s45
      %s48 = ssub.s32 %s35, %s47
      %s49 = ssub.s32 %s36, %s43
      %s50 = sor.u32 %s48, %s49
      %p51 = scmp.eq.s32.totalorder %s50, 0
      %s53 = sadd.s32 %s52, 1
      %s54 = scalar_select %p51, %s52, %s53
      %p57 = pneg %p51
      %p58 = scmp.eq.s32.totalorder %s28, 1
      %p59 = por %p57, %p58
      %p60 = scmp.ne.s32.totalorder %s52, %s55
      %p61 = scmp.eq.s32.totalorder %s28, 0
      %p62 = por %p60, %p61
      %p63 = scmp.ne.s32.totalorder %s52, %s55
      %p64 = scmp.eq.s32.totalorder %s33, 1
      %p65 = por %p63, %p64
      %p66 = scmp.ne.s32.totalorder %s55, %s56
      %p67 = scmp.eq.s32.totalorder %s33, 0
      %p68 = por %p66, %p67
      %p69 = scmp.ne.s32.totalorder %s55, %s56
      %p70 = scmp.eq.s32.totalorder %s34, 1
      %p71 = por %p69, %p70
      %p73 = scmp.ne.s32.totalorder %s56, %s72
      %p74 = scmp.eq.s32.totalorder %s34, 0
      %p75 = por %p73, %p74
      %s76 = ssub.s32 %s35, %s47
      %p77 = scmp.eq.s32.totalorder %s76, 0
      %s79 = sadd.s32 %s78, 1
      %s80 = scalar_select %p77, %s78, %s79
      %p83 = pneg %p77
      %p84 = scmp.eq.s32.totalorder %s28, 1
      %p85 = por %p83, %p84
      %p86 = scmp.ne.s32.totalorder %s78, %s81
      %p87 = scmp.eq.s32.totalorder %s28, 0
      %p88 = por %p86, %p87
      %p89 = scmp.ne.s32.totalorder %s78, %s81
      %p90 = scmp.eq.s32.totalorder %s33, 1
      %p91 = por %p89, %p90
      %p92 = scmp.ne.s32.totalorder %s81, %s82
      %p93 = scmp.eq.s32.totalorder %s33, 0
      %p94 = por %p92, %p93
      %p95 = scmp.ne.s32.totalorder %s81, %s82
      %p96 = scmp.eq.s32.totalorder %s34, 1
      %p97 = por %p95, %p96
      %p99 = scmp.ne.s32.totalorder %s82, %s98
      %p100 = scmp.eq.s32.totalorder %s34, 0
      %p101 = por %p99, %p100
      %s102 = ssub.s32 %s35, %s47
      %p103 = scmp.eq.s32.totalorder %s102, 0
      %s105 = sadd.s32 %s104, 1
      %s106 = scalar_select %p103, %s104, %s105
      %p109 = pneg %p103
      %p110 = scmp.eq.s32.totalorder %s28, 1
      %p111 = por %p109, %p110
      %p112 = scmp.ne.s32.totalorder %s104, %s107
      %p113 = scmp.eq.s32.totalorder %s28, 0
      %p114 = por %p112, %p113
      %p115 = scmp.ne.s32.totalorder %s104, %s107
      %p116 = scmp.eq.s32.totalorder %s33, 1
      %p117 = por %p115, %p116
      %p118 = scmp.ne.s32.totalorder %s107, %s108
      %p119 = scmp.eq.s32.totalorder %s33, 0
      %p120 = por %p118, %p119
      %p121 = scmp.ne.s32.totalorder %s107, %s108
      %p122 = scmp.eq.s32.totalorder %s34, 1
      %p123 = por %p121, %p122
      %p125 = scmp.ne.s32.totalorder %s108, %s124
      %p126 = scmp.eq.s32.totalorder %s34, 0
      %p127 = por %p125, %p126
      %s129 = sadd.s32 %s128, 1
      %p132 = scmp.eq.s32.totalorder %s28, 1
      %p133 = scmp.ne.s32.totalorder %s128, %s130
      %p134 = scmp.eq.s32.totalorder %s28, 0
      %p135 = por %p133, %p134
      %p136 = scmp.ne.s32.totalorder %s128, %s130
      %p137 = scmp.eq.s32.totalorder %s33, 1
      %p138 = por %p136, %p137
      %p139 = scmp.ne.s32.totalorder %s130, %s131
      %p140 = scmp.eq.s32.totalorder %s33, 0
      %p141 = por %p139, %p140
      %p142 = scmp.ne.s32.totalorder %s130, %s131
      %p143 = scmp.eq.s32.totalorder %s34, 1
      %p144 = por %p142, %p143
      %p146 = scmp.ne.s32.totalorder %s131, %s145
      %p147 = scmp.eq.s32.totalorder %s34, 0
      %p148 = por %p146, %p147
      %s150 = sadd.s32 %s149, 1
      %p153 = scmp.eq.s32.totalorder %s28, 1
      %p154 = scmp.ne.s32.totalorder %s149, %s151
      %p155 = scmp.eq.s32.totalorder %s28, 0
      %p156 = por %p154, %p155
      %p157 = scmp.ne.s32.totalorder %s149, %s151
      %p158 = scmp.eq.s32.totalorder %s33, 1
      %p159 = por %p157, %p158
      %p160 = scmp.ne.s32.totalorder %s151, %s152
      %p161 = scmp.eq.s32.totalorder %s33, 0
      %p162 = por %p160, %p161
      %p163 = scmp.ne.s32.totalorder %s151, %s152
      %p164 = scmp.eq.s32.totalorder %s34, 1
      %p165 = por %p163, %p164
      %p167 = scmp.ne.s32.totalorder %s152, %s166
      %p168 = scmp.eq.s32.totalorder %s34, 0
      %p169 = por %p167, %p168
      %s171 = sadd.s32 %s170, 1
      %p174 = scmp.eq.s32.totalorder %s28, 1
      %p175 = scmp.ne.s32.totalorder %s170, %s172
      %p176 = scmp.eq.s32.totalorder %s28, 0
      %p177 = por %p175, %p176
      %p178 = scmp.ne.s32.totalorder %s170, %s172
      %p179 = scmp.eq.s32.totalorder %s33, 1
      %p180 = por %p178, %p179
      %p181 = scmp.ne.s32.totalorder %s172, %s173
      %p182 = scmp.eq.s32.totalorder %s33, 0
      %p183 = por %p181, %p182
      %p184 = scmp.ne.s32.totalorder %s172, %s173
      %p185 = scmp.eq.s32.totalorder %s34, 1
      %p186 = por %p184, %p185
      %p188 = scmp.ne.s32.totalorder %s173, %s187
      %p189 = scmp.eq.s32.totalorder %s34, 0
      %p190 = por %p188, %p189
      %s192 = sadd.s32 %s191, 1
      %p195 = scmp.eq.s32.totalorder %s28, 1
      %p196 = scmp.ne.s32.totalorder %s191, %s193
      %p197 = scmp.eq.s32.totalorder %s28, 0
      %p198 = por %p196, %p197
      %p199 = scmp.ne.s32.totalorder %s191, %s193
      %p200 = scmp.eq.s32.totalorder %s33, 1
      %p201 = por %p199, %p200
      %p202 = scmp.ne.s32.totalorder %s193, %s194
      %p203 = scmp.eq.s32.totalorder %s33, 0
      %p204 = por %p202, %p203
      %p205 = scmp.ne.s32.totalorder %s193, %s194
      %p206 = scmp.eq.s32.totalorder %s34, 1
      %p207 = por %p205, %p206
      %p209 = scmp.ne.s32.totalorder %s194, %s208
      %p210 = scmp.eq.s32.totalorder %s34, 0
      %p211 = por %p209, %p210
      %s213 = sadd.s32 %s212, 1
      %p216 = scmp.eq.s32.totalorder %s28, 1
      %p217 = scmp.ne.s32.totalorder %s212, %s214
      %p218 = scmp.eq.s32.totalorder %s28, 0
      %p219 = por %p217, %p218
      %p220 = scmp.ne.s32.totalorder %s212, %s214
      %p221 = scmp.eq.s32.totalorder %s33, 1
      %p222 = por %p220, %p221
      %p223 = scmp.ne.s32.totalorder %s214, %s215
      %p224 = scmp.eq.s32.totalorder %s33, 0
      %p225 = por %p223, %p224
      %p226 = scmp.ne.s32.totalorder %s214, %s215
      %p227 = scmp.eq.s32.totalorder %s34, 1
      %p228 = por %p226, %p227
      %p230 = scmp.ne.s32.totalorder %s215, %s229
      %p231 = scmp.eq.s32.totalorder %s34, 0
      %p232 = por %p230, %p231
      %s234 = sadd.s32 %s233, 1
      %p237 = scmp.eq.s32.totalorder %s28, 1
      %p238 = scmp.ne.s32.totalorder %s233, %s235
      %p239 = scmp.eq.s32.totalorder %s28, 0
      %p240 = por %p238, %p239
      %p241 = scmp.ne.s32.totalorder %s233, %s235
      %p242 = scmp.eq.s32.totalorder %s33, 1
      %p243 = por %p241, %p242
      %p244 = scmp.ne.s32.totalorder %s235, %s236
      %p245 = scmp.eq.s32.totalorder %s33, 0
      %p246 = por %p244, %p245
      %p247 = scmp.ne.s32.totalorder %s235, %s236
      %p248 = scmp.eq.s32.totalorder %s34, 1
      %p249 = por %p247, %p248
      %p251 = scmp.ne.s32.totalorder %s236, %s250
      %p252 = scmp.eq.s32.totalorder %s34, 0
      %p253 = por %p251, %p252
      %s255 = sadd.s32 %s254, 1
      %p258 = scmp.eq.s32.totalorder %s28, 1
      %p259 = scmp.ne.s32.totalorder %s254, %s256
      %p260 = scmp.eq.s32.totalorder %s28, 0
      %p261 = por %p259, %p260
      %p262 = scmp.ne.s32.totalorder %s254, %s256
      %p263 = scmp.eq.s32.totalorder %s33, 1
      %p264 = por %p262, %p263
      %p265 = scmp.ne.s32.totalorder %s256, %s257
      %p266 = scmp.eq.s32.totalorder %s33, 0
      %p267 = por %p265, %p266
      %p268 = scmp.ne.s32.totalorder %s256, %s257
      %p269 = scmp.eq.s32.totalorder %s34, 1
      %p270 = por %p268, %p269
      %p272 = scmp.ne.s32.totalorder %s257, %s271
      %p273 = scmp.eq.s32.totalorder %s34, 0
      %p274 = por %p272, %p273
      %s276 = sadd.s32 %s275, 1
      %p279 = scmp.eq.s32.totalorder %s28, 1
      %p280 = scmp.ne.s32.totalorder %s275, %s277
      %p281 = scmp.eq.s32.totalorder %s28, 0
      %p282 = por %p280, %p281
      %p283 = scmp.ne.s32.totalorder %s275, %s277
      %p284 = scmp.eq.s32.totalorder %s33, 1
      %p285 = por %p283, %p284
      %p286 = scmp.ne.s32.totalorder %s277, %s278
      %p287 = scmp.eq.s32.totalorder %s33, 0
      %p288 = por %p286, %p287
      %p289 = scmp.ne.s32.totalorder %s277, %s278
      %p290 = scmp.eq.s32.totalorder %s34, 1
      %p291 = por %p289, %p290
      %p293 = scmp.ne.s32.totalorder %s278, %s292
      %p294 = scmp.eq.s32.totalorder %s34, 0
      %p295 = por %p293, %p294
      %s296 = ssub.s32 %s35, %s47
      %s297 = ssub.s32 %s36, %s43
      %s298 = sor.u32 %s296, %s297
      %p299 = scmp.eq.s32.totalorder %s298, 0
      %s301 = sadd.s32 %s300, 1
      %s302 = scalar_select %p299, %s300, %s301
      %p305 = pneg %p299
      %p306 = scmp.eq.s32.totalorder %s28, 1
      %p307 = por %p305, %p306
      %p308 = scmp.ne.s32.totalorder %s300, %s303
      %p309 = scmp.eq.s32.totalorder %s28, 0
      %p310 = por %p308, %p309
      %p311 = scmp.ne.s32.totalorder %s300, %s303
      %p312 = scmp.eq.s32.totalorder %s33, 1
      %p313 = por %p311, %p312
      %p314 = scmp.ne.s32.totalorder %s303, %s304
      %p315 = scmp.eq.s32.totalorder %s33, 0
      %p316 = por %p314, %p315
      %p317 = scmp.ne.s32.totalorder %s303, %s304
      %p318 = scmp.eq.s32.totalorder %s34, 1
      %p319 = por %p317, %p318
      %p321 = scmp.ne.s32.totalorder %s304, %s320
      %p322 = scmp.eq.s32.totalorder %s34, 0
      %p323 = por %p321, %p322
      %p324 = scmp.le.s32.totalorder 1, %s28
      %p325 = scmp.lt.s32.totalorder %s28, 3
      %p326 = pnand %p324, %p325
      %p327 = pneg %p326
      // Predicated region
      $region9: #{tpu_custom_call.1} parent=5 // pred_check
        _
      $region10: #{tpu_custom_call.1} parent=5 // pred_check_branch
        %329 = sbr.rel (%p326) target = $region12
      $region11: #{tpu_custom_call.1} parent=5 // pred_region
        %s330 = ssub.s32 %s28, 1
        // Predicated region
        $region13: #{tpu_custom_call.1} parent=11 // pred_check
          %p331 = pneg %p141
        $region14: #{tpu_custom_call.1} parent=11 // pred_check_branch
          %333 = sbr.rel (%p331) target = $region16
        $region15: #{tpu_custom_call.1} parent=11 // pred_region
          %s335 = ssub.s32 512, 512
          %336 = vsyncadd [#allocation9], %s335
          %s337 = sshll.u32 [#allocation8], 4
          %s338 = int_to_ptr.vmem [resolvable:$true] %s337
          %343 = dma.hbm_to_vmem [thread:$0]  %s3, 512, %s338, [#allocation9], 128, 128, 8
        $region16: #{tpu_custom_call.1} parent=11 // pred_fallthru
          _
        // Predicated region
        $region17: #{tpu_custom_call.1} parent=11 // pred_check
          %p344 = pneg %p162
        $region18: #{tpu_custom_call.1} parent=11 // pred_check_branch
          %346 = sbr.rel (%p344) target = $region20
        $region19: #{tpu_custom_call.1} parent=11 // pred_region
          %s348 = ssub.s32 512, 512
          %349 = vsyncadd [#allocation9], %s348
          %s350 = sshll.u32 [#allocation10], 4
          %s351 = int_to_ptr.vmem [resolvable:$true] %s350
          %356 = dma.hbm_to_vmem [thread:$0]  %s4, 512, %s351, [#allocation9], 128, 128, 8
        $region20: #{tpu_custom_call.1} parent=11 // pred_fallthru
          _
        // Predicated region
        $region21: #{tpu_custom_call.1} parent=11 // pred_check
          %p357 = pneg %p183
        $region22: #{tpu_custom_call.1} parent=11 // pred_check_branch
          %359 = sbr.rel (%p357) target = $region24
        $region23: #{tpu_custom_call.1} parent=11 // pred_region
          %s361 = ssub.s32 512, 512
          %362 = vsyncadd [#allocation12], %s361
          %s363 = sshll.u32 [#allocation11], 4
          %s364 = int_to_ptr.vmem [resolvable:$true] %s363
          %369 = dma.hbm_to_vmem [thread:$0]  %s5, 512, %s364, [#allocation12], 128, 128, 8
        $region24: #{tpu_custom_call.1} parent=11 // pred_fallthru
          _
        // Predicated region
        $region25: #{tpu_custom_call.1} parent=11 // pred_check
          %p370 = pneg %p204
        $region26: #{tpu_custom_call.1} parent=11 // pred_check_branch
          %372 = sbr.rel (%p370) target = $region28
        $region27: #{tpu_custom_call.1} parent=11 // pred_region
          %s374 = ssub.s32 512, 512
          %375 = vsyncadd [#allocation12], %s374
          %s376 = sshll.u32 [#allocation13], 4
          %s377 = int_to_ptr.vmem [resolvable:$true] %s376
          %382 = dma.hbm_to_vmem [thread:$0]  %s6, 512, %s377, [#allocation12], 128, 128, 8
        $region28: #{tpu_custom_call.1} parent=11 // pred_fallthru
          _
        // Predicated region
        $region29: #{tpu_custom_call.1} parent=11 // pred_check
          %p383 = pneg %p225
        $region30: #{tpu_custom_call.1} parent=11 // pred_check_branch
          %385 = sbr.rel (%p383) target = $region32
        $region31: #{tpu_custom_call.1} parent=11 // pred_region
          _
        $region32: #{tpu_custom_call.1} parent=11 // pred_fallthru
          _
        // Predicated region
        $region33: #{tpu_custom_call.1} parent=11 // pred_check
          %p386 = pneg %p246
        $region34: #{tpu_custom_call.1} parent=11 // pred_check_branch
          %388 = sbr.rel (%p386) target = $region36
        $region35: #{tpu_custom_call.1} parent=11 // pred_region
          _
        $region36: #{tpu_custom_call.1} parent=11 // pred_fallthru
          _
        // Predicated region
        $region37: #{tpu_custom_call.1} parent=11 // pred_check
          %p389 = pneg %p267
        $region38: #{tpu_custom_call.1} parent=11 // pred_check_branch
          %391 = sbr.rel (%p389) target = $region40
        $region39: #{tpu_custom_call.1} parent=11 // pred_region
          _
        $region40: #{tpu_custom_call.1} parent=11 // pred_fallthru
          _
        // Predicated region
        $region41: #{tpu_custom_call.1} parent=11 // pred_check
          %p392 = pneg %p288
        $region42: #{tpu_custom_call.1} parent=11 // pred_check_branch
          %394 = sbr.rel (%p392) target = $region44
        $region43: #{tpu_custom_call.1} parent=11 // pred_region
          _
        $region44: #{tpu_custom_call.1} parent=11 // pred_fallthru
          _
      $region12: #{tpu_custom_call.1} parent=5 // pred_fallthru
        _
      %p395 = scmp.lt.s32.totalorder %s28, 2
      // Predicated region
      $region45: #{tpu_custom_call.1} parent=5 // pred_check
        %p396 = pneg %p395
      $region46: #{tpu_custom_call.1} parent=5 // pred_check_branch
        %398 = sbr.rel (%p396) target = $region48
      $region47: #{tpu_custom_call.1} parent=5 // pred_region
        // Predicated region
        $region49: #{tpu_custom_call.1} parent=47 // pred_check
          %p399 = pneg %p62
        $region50: #{tpu_custom_call.1} parent=47 // pred_check_branch
          %401 = sbr.rel (%p399) target = $region52
        $region51: #{tpu_custom_call.1} parent=47 // pred_region
          %s402 = sand.u32 %s52, 1
          %s403 = scalar_lea.sflag [#allocation3], %s402
          %s404 = sand.u32 %s52, 1
          %s405 = smul.addr %s404, 8
          %s406 = scalar_lea.vmem [#allocation2], %s405
          %s408 = ssub.s32 128, 128
          %409 = vsyncadd %s403, %s408
          %s410 = sadd.s32 %s36, %s35
          %s411 = smul.addr %s410, 128
          %s412 = scalar_lea.hbm %s0, %s411
          %s414 = sshll.u32 %s406, 4
          %s415 = int_to_ptr.vmem [resolvable:$true] %s414
          %417 = dma.hbm_to_vmem [thread:$0]  %s412, 128, %s415, %s403
        $region52: #{tpu_custom_call.1} parent=47 // pred_fallthru
          _
        // Predicated region
        $region53: #{tpu_custom_call.1} parent=47 // pred_check
          %p418 = pneg %p88
        $region54: #{tpu_custom_call.1} parent=47 // pred_check_branch
          %420 = sbr.rel (%p418) target = $region56
        $region55: #{tpu_custom_call.1} parent=47 // pred_region
          %s421 = sand.u32 %s28, 1
          %s422 = scalar_lea.sflag [#allocation6], %s421
          %s423 = sand.u32 %s78, 1
          %s424 = smul.addr %s423, 8
          %s425 = scalar_lea.vmem [#allocation5], %s424
          %s427 = ssub.s32 128, 128
          %428 = vsyncadd %s422, %s427
          %s429 = smul.addr %s35, 128
          %s430 = scalar_lea.hbm %s1, %s429
          %s432 = sshll.u32 %s425, 4
          %s433 = int_to_ptr.vmem [resolvable:$true] %s432
          %435 = dma.hbm_to_vmem [thread:$0]  %s430, 128, %s433, %s422
        $region56: #{tpu_custom_call.1} parent=47 // pred_fallthru
          _
        // Predicated region
        $region57: #{tpu_custom_call.1} parent=47 // pred_check
          %p436 = pneg %p114
        $region58: #{tpu_custom_call.1} parent=47 // pred_check_branch
          %438 = sbr.rel (%p436) target = $region60
        $region59: #{tpu_custom_call.1} parent=47 // pred_region
          %s439 = sand.u32 %s28, 1
          %s440 = scalar_lea.sflag [#allocation6], %s439
          %s441 = sand.u32 %s104, 1
          %s442 = smul.addr %s441, 8
          %s443 = scalar_lea.vmem [#allocation7], %s442
          %s445 = ssub.s32 128, 128
          %446 = vsyncadd %s440, %s445
          %s447 = smul.addr %s35, 128
          %s448 = scalar_lea.hbm %s2, %s447
          %s450 = sshll.u32 %s443, 4
          %s451 = int_to_ptr.vmem [resolvable:$true] %s450
          %453 = dma.hbm_to_vmem [thread:$0]  %s448, 128, %s451, %s440
        $region60: #{tpu_custom_call.1} parent=47 // pred_fallthru
          _
      $region48: #{tpu_custom_call.1} parent=5 // pred_fallthru
        _
      %p454 = scmp.le.s32.totalorder 1, %s28
      %p455 = scmp.lt.s32.totalorder %s28, 3
      %p456 = pnand %p454, %p455
      %p457 = pneg %p456
      // Predicated region
      $region61: #{tpu_custom_call.1} parent=5 // pred_check
        _
      $region62: #{tpu_custom_call.1} parent=5 // pred_check_branch
        %459 = sbr.rel (%p456) target = $region64
      $region63: #{tpu_custom_call.1} parent=5 // pred_region
        %s460 = ssub.s32 %s28, 1
        %s461 = sand.u32 %s55, 1
        %s462 = scalar_lea.sflag [#allocation3], %s461
        %s463 = sand.u32 %s55, 1
        %s464 = smul.addr %s463, 8
        %s465 = scalar_lea.vmem [#allocation2], %s464
        // Predicated region
        $region65: #{tpu_custom_call.1} parent=63 // pred_check
          %p466 = pneg %p68
        $region66: #{tpu_custom_call.1} parent=63 // pred_check_branch
          %468 = sbr.rel (%p466) target = $region68
        $region67: #{tpu_custom_call.1} parent=63 // pred_region
          %469 = dma.done %s462, 128
        $region68: #{tpu_custom_call.1} parent=63 // pred_fallthru
          _
        %s470 = sand.u32 %s33, 1
        %s471 = scalar_lea.sflag [#allocation6], %s470
        %s472 = sand.u32 %s81, 1
        %s473 = smul.addr %s472, 8
        %s474 = scalar_lea.vmem [#allocation5], %s473
        // Predicated region
        $region69: #{tpu_custom_call.1} parent=63 // pred_check
          %p475 = pneg %p94
        $region70: #{tpu_custom_call.1} parent=63 // pred_check_branch
          %477 = sbr.rel (%p475) target = $region72
        $region71: #{tpu_custom_call.1} parent=63 // pred_region
          %478 = dma.done %s471, 128
        $region72: #{tpu_custom_call.1} parent=63 // pred_fallthru
          _
        %s479 = sand.u32 %s33, 1
        %s480 = scalar_lea.sflag [#allocation6], %s479
        %s481 = sand.u32 %s107, 1
        %s482 = smul.addr %s481, 8
        %s483 = scalar_lea.vmem [#allocation7], %s482
        // Predicated region
        $region73: #{tpu_custom_call.1} parent=63 // pred_check
          %p484 = pneg %p120
        $region74: #{tpu_custom_call.1} parent=63 // pred_check_branch
          %486 = sbr.rel (%p484) target = $region76
        $region75: #{tpu_custom_call.1} parent=63 // pred_region
          %487 = dma.done %s480, 128
        $region76: #{tpu_custom_call.1} parent=63 // pred_fallthru
          _
        // Predicated region
        $region77: #{tpu_custom_call.1} parent=63 // pred_check
          %p488 = pneg %p141
        $region78: #{tpu_custom_call.1} parent=63 // pred_check_branch
          %490 = sbr.rel (%p488) target = $region80
        $region79: #{tpu_custom_call.1} parent=63 // pred_region
          %491 = dma.done [#allocation9], 512
        $region80: #{tpu_custom_call.1} parent=63 // pred_fallthru
          _
        // Predicated region
        $region81: #{tpu_custom_call.1} parent=63 // pred_check
          %p492 = pneg %p162
        $region82: #{tpu_custom_call.1} parent=63 // pred_check_branch
          %494 = sbr.rel (%p492) target = $region84
        $region83: #{tpu_custom_call.1} parent=63 // pred_region
          %495 = dma.done [#allocation9], 512
        $region84: #{tpu_custom_call.1} parent=63 // pred_fallthru
          _
        // Predicated region
        $region85: #{tpu_custom_call.1} parent=63 // pred_check
          %p496 = pneg %p183
        $region86: #{tpu_custom_call.1} parent=63 // pred_check_branch
          %498 = sbr.rel (%p496) target = $region88
        $region87: #{tpu_custom_call.1} parent=63 // pred_region
          %499 = dma.done [#allocation12], 512
        $region88: #{tpu_custom_call.1} parent=63 // pred_fallthru
          _
        // Predicated region
        $region89: #{tpu_custom_call.1} parent=63 // pred_check
          %p500 = pneg %p204
        $region90: #{tpu_custom_call.1} parent=63 // pred_check_branch
          %502 = sbr.rel (%p500) target = $region92
        $region91: #{tpu_custom_call.1} parent=63 // pred_region
          %503 = dma.done [#allocation12], 512
        $region92: #{tpu_custom_call.1} parent=63 // pred_fallthru
          _
        %s504 = sand.u32 %s55, 1
        %s505 = scalar_lea.sflag [#allocation3], %s504
        %s506 = sand.u32 %s55, 1
        %s507 = smul.addr %s506, 8
        %s508 = scalar_lea.vmem [#allocation2], %s507
        %p509 = pneg %p68
        %p510 = pneg %p65
        %s511 = sand.u32 %s33, 1
        %s512 = scalar_lea.sflag [#allocation6], %s511
        %s513 = sand.u32 %s81, 1
        %s514 = smul.addr %s513, 8
        %s515 = scalar_lea.vmem [#allocation5], %s514
        %p516 = pneg %p94
        %p517 = pneg %p91
        %s518 = sand.u32 %s33, 1
        %s519 = scalar_lea.sflag [#allocation6], %s518
        %s520 = sand.u32 %s107, 1
        %s521 = smul.addr %s520, 8
        %s522 = scalar_lea.vmem [#allocation7], %s521
        %p523 = pneg %p120
        %p524 = pneg %p117
        %p525 = pneg %p141
        %p526 = pneg %p138
        %p527 = pneg %p162
        %p528 = pneg %p159
        %p529 = pneg %p183
        %p530 = pneg %p180
        %p531 = pneg %p204
        %p532 = pneg %p201
        %p533 = pneg %p225
        %p534 = pneg %p222
        %p535 = pneg %p246
        %p536 = pneg %p243
        %p537 = pneg %p267
        %p538 = pneg %p264
        %p539 = pneg %p288
        %p540 = pneg %p285
        %p541 = pneg %p316
        %p542 = pneg %p313
        %s543 = sand.u32 %s303, 1
        %s544 = scalar_lea.sflag [#allocation4], %s543
        %s545 = sand.u32 %s303, 1
        %s546 = smul.addr %s545, 8
        %s547 = scalar_lea.vmem [#allocation14], %s546
        %v548 = vld [vmem:[%s465] sm:$0xff]
        %v549 = vld [vmem:[%s474] sm:$0xff]
        %v550 = vld [vmem:[%s483] sm:$0xff]
        %v551 = vld [vmem:[#allocation8] sm:$0xff]
        %v552 = vld [vmem:[#allocation8 + $0x8] sm:$0xff]
        %v553 = vld [vmem:[#allocation8 + $0x10] sm:$0xff]
        %v554 = vld [vmem:[#allocation8 + $0x18] sm:$0xff]
        %v555 = vld [vmem:[%s7] sm:$0x1]
        %v557 = vlaneseq
        %v558 = vshrl.u32 %v557, 7
        %v559 = vsub.s32 0, %v558
        %v560 = vrot.slane %v555, %v559
        %vm562 = vcmask 261120
        %v564 = vsel %vm562, %v548, 0
        %566 = vmatprep.subr.mxu0 0.0
        %567 = vmatpush1.msra.mxu0 %v551
        %568 = vmatprep.subr.mxu0 0.0
        %569 = vmatpush1.msra.mxu0 %v552
        %570 = vmatprep.subr.mxu0 0.0
        %571 = vmatpush1.msra.mxu0 %v553
        %572 = vmatprep.subr.mxu0 0.0
        %573 = vmatpush1.msra.mxu0 %v554
        %574 = vmatprep.subr.mxu0 0.0
        %575 = vmatpush1.msra.mxu0 0.0
        %576 = vmatprep.subr.mxu0 0.0
        %577 = vmatpush1.msra.mxu0 0.0
        %578 = vmatprep.subr.mxu0 0.0
        %579 = vmatpush1.msra.mxu0 0.0
        %580 = vmatprep.subr.mxu0 0.0
        %581 = vmatpush1.msra.mxu0 0.0
        %582 = vmatprep.subr.mxu0 0.0
        %583 = vmatpush1.msra.mxu0 0.0
        %584 = vmatprep.subr.mxu0 0.0
        %585 = vmatpush1.msra.mxu0 0.0
        %586 = vmatprep.subr.mxu0 0.0
        %587 = vmatpush1.msra.mxu0 0.0
        %588 = vmatprep.subr.mxu0 0.0
        %589 = vmatpush1.msra.mxu0 0.0
        %590 = vmatprep.subr.mxu0 0.0
        %591 = vmatpush1.msra.mxu0 0.0
        %592 = vmatprep.subr.mxu0 0.0
        %593 = vmatpush1.msra.mxu0 0.0
        %594 = vmatprep.subr.mxu0 0.0
        %595 = vmatpush1.msra.mxu0 0.0
        %596 = vmatprep.subr.mxu0 0.0
        %597 = vmatpush1.msra.mxu0 0.0
        %598 = vmatprep.subr.mxu0 0.0
        %599 = vmatpush1.msra.mxu0 0.0
        %600 = vmatprep.subr.mxu0 0.0
        %601 = vmatpush1.msra.mxu0 0.0
        %602 = vmatprep.subr.mxu0 0.0
        %603 = vmatpush1.msra.mxu0 0.0
        %604 = vmatprep.subr.mxu0 0.0
        %605 = vmatpush1.msra.mxu0 0.0
        %606 = vmatprep.subr.mxu0 0.0
        %607 = vmatpush1.msra.mxu0 0.0
        %608 = vmatprep.subr.mxu0 0.0
        %609 = vmatpush1.msra.mxu0 0.0
        %610 = vmatprep.subr.mxu0 0.0
        %611 = vmatpush1.msra.mxu0 0.0
        %612 = vmatprep.subr.mxu0 0.0
        %613 = vmatpush1.msra.mxu0 0.0
        %614 = vmatprep.subr.mxu0 0.0
        %615 = vmatpush1.msra.mxu0 0.0
        %616 = vmatprep.subr.mxu0 0.0
        %617 = vmatpush1.msra.mxu0 0.0
        %618 = vmatprep.subr.mxu0 0.0
        %619 = vmatpush1.msra.mxu0 0.0
        %620 = vmatprep.subr.mxu0 0.0
        %621 = vmatpush1.msra.mxu0 0.0
        %622 = vmatprep.subr.mxu0 0.0
        %623 = vmatpush1.msra.mxu0 0.0
        %624 = vmatprep.subr.mxu0 0.0
        %625 = vmatpush1.msra.mxu0 0.0
        %626 = vmatprep.subr.mxu0 0.0
        %627 = vmatpush1.msra.mxu0 0.0
        %628 = vmatprep.subr.mxu0 0.0
        %629 = vmatpush1.msra.mxu0 0.0
        %630 = vmatprep.mubr.f32.mxu0 0.0
        %631 = vmatmul.mubr.f32.gmra.mrb[0].mxu0 %v564
        %v632 = vpop.f32.mrb[0].mxu0
        %v633 = vadd.f32 %v560, %v632
        %v634 = vpop.f32.mrb[0].mxu0
        %635 = vdwg.mxu0
        %v636 = vld [vmem:[#allocation10] sm:$0xff]
        %v637 = vld [vmem:[#allocation10 + $0x8] sm:$0xff]
        %v638 = vld [vmem:[#allocation10 + $0x10] sm:$0xff]
        %v639 = vld [vmem:[#allocation10 + $0x18] sm:$0xff]
        %v640 = vld [vmem:[%s8] sm:$0x1]
        %v642 = vlaneseq
        %v643 = vshrl.u32 %v642, 7
        %v644 = vsub.s32 0, %v643
        %v645 = vrot.slane %v640, %v644
        %v648 = vsel %vm562, %v549, 0
        %650 = vmatprep.subr.mxu0 0.0
        %651 = vmatpush1.msra.mxu0 %v636
        %652 = vmatprep.subr.mxu0 0.0
        %653 = vmatpush1.msra.mxu0 %v637
        %654 = vmatprep.subr.mxu0 0.0
        %655 = vmatpush1.msra.mxu0 %v638
        %656 = vmatprep.subr.mxu0 0.0
        %657 = vmatpush1.msra.mxu0 %v639
        %658 = vmatprep.subr.mxu0 0.0
        %659 = vmatpush1.msra.mxu0 0.0
        %660 = vmatprep.subr.mxu0 0.0
        %661 = vmatpush1.msra.mxu0 0.0
        %662 = vmatprep.subr.mxu0 0.0
        %663 = vmatpush1.msra.mxu0 0.0
        %664 = vmatprep.subr.mxu0 0.0
        %665 = vmatpush1.msra.mxu0 0.0
        %666 = vmatprep.subr.mxu0 0.0
        %667 = vmatpush1.msra.mxu0 0.0
        %668 = vmatprep.subr.mxu0 0.0
        %669 = vmatpush1.msra.mxu0 0.0
        %670 = vmatprep.subr.mxu0 0.0
        %671 = vmatpush1.msra.mxu0 0.0
        %672 = vmatprep.subr.mxu0 0.0
        %673 = vmatpush1.msra.mxu0 0.0
        %674 = vmatprep.subr.mxu0 0.0
        %675 = vmatpush1.msra.mxu0 0.0
        %676 = vmatprep.subr.mxu0 0.0
        %677 = vmatpush1.msra.mxu0 0.0
        %678 = vmatprep.subr.mxu0 0.0
        %679 = vmatpush1.msra.mxu0 0.0
        %680 = vmatprep.subr.mxu0 0.0
        %681 = vmatpush1.msra.mxu0 0.0
        %682 = vmatprep.subr.mxu0 0.0
        %683 = vmatpush1.msra.mxu0 0.0
        %684 = vmatprep.subr.mxu0 0.0
        %685 = vmatpush1.msra.mxu0 0.0
        %686 = vmatprep.subr.mxu0 0.0
        %687 = vmatpush1.msra.mxu0 0.0
        %688 = vmatprep.subr.mxu0 0.0
        %689 = vmatpush1.msra.mxu0 0.0
        %690 = vmatprep.subr.mxu0 0.0
        %691 = vmatpush1.msra.mxu0 0.0
        %692 = vmatprep.subr.mxu0 0.0
        %693 = vmatpush1.msra.mxu0 0.0
        %694 = vmatprep.subr.mxu0 0.0
        %695 = vmatpush1.msra.mxu0 0.0
        %696 = vmatprep.subr.mxu0 0.0
        %697 = vmatpush1.msra.mxu0 0.0
        %698 = vmatprep.subr.mxu0 0.0
        %699 = vmatpush1.msra.mxu0 0.0
        %700 = vmatprep.subr.mxu0 0.0
        %701 = vmatpush1.msra.mxu0 0.0
        %702 = vmatprep.subr.mxu0 0.0
        %703 = vmatpush1.msra.mxu0 0.0
        %704 = vmatprep.subr.mxu0 0.0
        %705 = vmatpush1.msra.mxu0 0.0
        %706 = vmatprep.subr.mxu0 0.0
        %707 = vmatpush1.msra.mxu0 0.0
        %708 = vmatprep.subr.mxu0 0.0
        %709 = vmatpush1.msra.mxu0 0.0
        %710 = vmatprep.subr.mxu0 0.0
        %711 = vmatpush1.msra.mxu0 0.0
        %712 = vmatprep.subr.mxu0 0.0
        %713 = vmatpush1.msra.mxu0 0.0
        %714 = vmatprep.mubr.f32.mxu0 0.0
        %715 = vmatmul.mubr.f32.gmra.mrb[0].mxu0 %v648
        %v716 = vpop.f32.mrb[0].mxu0
        %v717 = vadd.f32 %v645, %v716
        %v718 = vpop.f32.mrb[0].mxu0
        %719 = vdwg.mxu0
        %v720 = vld [vmem:[#allocation11] sm:$0xff]
        %v721 = vld [vmem:[#allocation11 + $0x8] sm:$0xff]
        %v722 = vld [vmem:[#allocation11 + $0x10] sm:$0xff]
        %v723 = vld [vmem:[#allocation11 + $0x18] sm:$0xff]
        %v724 = vld [vmem:[%s9] sm:$0x1]
        %v726 = vlaneseq
        %v727 = vshrl.u32 %v726, 7
        %v728 = vsub.s32 0, %v727
        %v729 = vrot.slane %v724, %v728
        %v732 = vsel %vm562, %v550, 0
        %734 = vmatprep.subr.mxu0 0.0
        %735 = vmatpush1.msra.mxu0 %v720
        %736 = vmatprep.subr.mxu0 0.0
        %737 = vmatpush1.msra.mxu0 %v721
        %738 = vmatprep.subr.mxu0 0.0
        %739 = vmatpush1.msra.mxu0 %v722
        %740 = vmatprep.subr.mxu0 0.0
        %741 = vmatpush1.msra.mxu0 %v723
        %742 = vmatprep.subr.mxu0 0.0
        %743 = vmatpush1.msra.mxu0 0.0
        %744 = vmatprep.subr.mxu0 0.0
        %745 = vmatpush1.msra.mxu0 0.0
        %746 = vmatprep.subr.mxu0 0.0
        %747 = vmatpush1.msra.mxu0 0.0
        %748 = vmatprep.subr.mxu0 0.0
        %749 = vmatpush1.msra.mxu0 0.0
        %750 = vmatprep.subr.mxu0 0.0
        %751 = vmatpush1.msra.mxu0 0.0
        %752 = vmatprep.subr.mxu0 0.0
        %753 = vmatpush1.msra.mxu0 0.0
        %754 = vmatprep.subr.mxu0 0.0
        %755 = vmatpush1.msra.mxu0 0.0
        %756 = vmatprep.subr.mxu0 0.0
        %757 = vmatpush1.msra.mxu0 0.0
        %758 = vmatprep.subr.mxu0 0.0
        %759 = vmatpush1.msra.mxu0 0.0
        %760 = vmatprep.subr.mxu0 0.0
        %761 = vmatpush1.msra.mxu0 0.0
        %762 = vmatprep.subr.mxu0 0.0
        %763 = vmatpush1.msra.mxu0 0.0
        %764 = vmatprep.subr.mxu0 0.0
        %765 = vmatpush1.msra.mxu0 0.0
        %766 = vmatprep.subr.mxu0 0.0
        %767 = vmatpush1.msra.mxu0 0.0
        %768 = vmatprep.subr.mxu0 0.0
        %769 = vmatpush1.msra.mxu0 0.0
        %770 = vmatprep.subr.mxu0 0.0
        %771 = vmatpush1.msra.mxu0 0.0
        %772 = vmatprep.subr.mxu0 0.0
        %773 = vmatpush1.msra.mxu0 0.0
        %774 = vmatprep.subr.mxu0 0.0
        %775 = vmatpush1.msra.mxu0 0.0
        %776 = vmatprep.subr.mxu0 0.0
        %777 = vmatpush1.msra.mxu0 0.0
        %778 = vmatprep.subr.mxu0 0.0
        %779 = vmatpush1.msra.mxu0 0.0
        %780 = vmatprep.subr.mxu0 0.0
        %781 = vmatpush1.msra.mxu0 0.0
        %782 = vmatprep.subr.mxu0 0.0
        %783 = vmatpush1.msra.mxu0 0.0
        %784 = vmatprep.subr.mxu0 0.0
        %785 = vmatpush1.msra.mxu0 0.0
        %786 = vmatprep.subr.mxu0 0.0
        %787 = vmatpush1.msra.mxu0 0.0
        %788 = vmatprep.subr.mxu0 0.0
        %789 = vmatpush1.msra.mxu0 0.0
        %790 = vmatprep.subr.mxu0 0.0
        %791 = vmatpush1.msra.mxu0 0.0
        %792 = vmatprep.subr.mxu0 0.0
        %793 = vmatpush1.msra.mxu0 0.0
        %794 = vmatprep.subr.mxu0 0.0
        %795 = vmatpush1.msra.mxu0 0.0
        %796 = vmatprep.subr.mxu0 0.0
        %797 = vmatpush1.msra.mxu0 0.0
        %798 = vmatprep.mubr.f32.mxu0 0.0
        %799 = vmatmul.mubr.f32.gmra.mrb[0].mxu0 %v732
        %v800 = vpop.f32.mrb[0].mxu0
        %v801 = vadd.f32 %v729, %v800
        %v802 = vpop.f32.mrb[0].mxu0
        %803 = vdwg.mxu0
        %v804 = vmul.f32 %v633, 0.35355338
        %806 = vrot.lane.b32.xlu0 %v804, 120
        %v807 = vpop.permute.xlu0 %806
        %809 = vrot.lane.b32.xlu0 %v804, 112
        %v810 = vpop.permute.xlu0 %809
        %812 = vrot.lane.b32.xlu0 %v804, 104
        %v813 = vpop.permute.xlu0 %812
        %v815 = vcombine.low %v804, %v810
        %v816 = vcombine.high %v804, %v810
        %v818 = vunpack.c.l.s4 1983009808
        %v819 = vunpack.c.0.s8 %v818
        %v820 = vlaneseq
        %v821 = vshrl.u32 %v820, 7
        %v822 = vsub.s32 %v819, %v821
        %v823 = vrot.slane %v815, %v822
        %v825 = vunpack.c.l.s4 1983009808
        %v826 = vunpack.c.0.s8 %v825
        %v827 = vlaneseq
        %v828 = vshrl.u32 %v827, 7
        %v829 = vsub.s32 %v826, %v828
        %v830 = vrot.slane %v816, %v829
        %v831 = vcombine.low %v807, %v813
        %v832 = vcombine.high %v807, %v813
        %v834 = vunpack.c.l.s4 1983009808
        %v835 = vunpack.c.0.s8 %v834
        %v836 = vlaneseq
        %v837 = vshrl.u32 %v836, 7
        %v838 = vsub.s32 %v835, %v837
        %v839 = vrot.slane %v831, %v838
        %v841 = vunpack.c.l.s4 1983009808
        %v842 = vunpack.c.0.s8 %v841
        %v843 = vlaneseq
        %v844 = vshrl.u32 %v843, 7
        %v845 = vsub.s32 %v842, %v844
        %v846 = vrot.slane %v832, %v845
        %v847 = vcombine.low %v823, %v839
        %v848 = vcombine.high %v823, %v839
        %v850 = vunpack.c.l.s4 1934713408
        %v851 = vunpack.c.0.s8 %v850
        %v852 = vlaneseq
        %v853 = vshrl.u32 %v852, 7
        %v854 = vsub.s32 %v851, %v853
        %v855 = vrot.slane %v847, %v854
        %v857 = vunpack.c.l.s4 1934713408
        %v858 = vunpack.c.0.s8 %v857
        %v859 = vlaneseq
        %v860 = vshrl.u32 %v859, 7
        %v861 = vsub.s32 %v858, %v860
        %v862 = vrot.slane %v848, %v861
        %v863 = vcombine.low %v830, %v846
        %v864 = vcombine.high %v830, %v846
        %v866 = vunpack.c.l.s4 1934713408
        %v867 = vunpack.c.0.s8 %v866
        %v868 = vlaneseq
        %v869 = vshrl.u32 %v868, 7
        %v870 = vsub.s32 %v867, %v869
        %v871 = vrot.slane %v863, %v870
        %v873 = vunpack.c.l.s4 1934713408
        %v874 = vunpack.c.0.s8 %v873
        %v875 = vlaneseq
        %v876 = vshrl.u32 %v875, 7
        %v877 = vsub.s32 %v874, %v876
        %v878 = vrot.slane %v864, %v877
        %v879 = vcombine.high %v855, 0.0
        %v880 = vcombine.high %v862, 0.0
        %v881 = vcombine.high %v871, 0.0
        %v882 = vcombine.high %v878, 0.0
        %v883 = vcombine.low %v855, %v862
        %v885 = vunpack.c.l.s4 1983009808
        %v886 = vunpack.c.0.s8 %v885
        %v887 = vlaneseq
        %v888 = vshrl.u32 %v887, 7
        %v889 = vsub.s32 %v886, %v888
        %v890 = vrot.slane %v883, %v889
        %v891 = vcombine.low %v879, %v880
        %v893 = vunpack.c.l.s4 1983009808
        %v894 = vunpack.c.0.s8 %v893
        %v895 = vlaneseq
        %v896 = vshrl.u32 %v895, 7
        %v897 = vsub.s32 %v894, %v896
        %v898 = vrot.slane %v891, %v897
        %v899 = vcombine.low %v871, %v878
        %v901 = vunpack.c.l.s4 1983009808
        %v902 = vunpack.c.0.s8 %v901
        %v903 = vlaneseq
        %v904 = vshrl.u32 %v903, 7
        %v905 = vsub.s32 %v902, %v904
        %v906 = vrot.slane %v899, %v905
        %v907 = vcombine.low %v881, %v882
        %v909 = vunpack.c.l.s4 1983009808
        %v910 = vunpack.c.0.s8 %v909
        %v911 = vlaneseq
        %v912 = vshrl.u32 %v911, 7
        %v913 = vsub.s32 %v910, %v912
        %v914 = vrot.slane %v907, %v913
        %v915 = vcombine.low %v890, %v898
        %v916 = vcombine.high %v890, %v898
        %v918 = vunpack.c.l.s4 1934713408
        %v919 = vunpack.c.0.s8 %v918
        %v920 = vlaneseq
        %v921 = vshrl.u32 %v920, 7
        %v922 = vsub.s32 %v919, %v921
        %v923 = vrot.slane %v915, %v922
        %v925 = vunpack.c.l.s4 1934713408
        %v926 = vunpack.c.0.s8 %v925
        %v927 = vlaneseq
        %v928 = vshrl.u32 %v927, 7
        %v929 = vsub.s32 %v926, %v928
        %v930 = vrot.slane %v916, %v929
        %v931 = vcombine.low %v906, %v914
        %v932 = vcombine.high %v906, %v914
        %v934 = vunpack.c.l.s4 1934713408
        %v935 = vunpack.c.0.s8 %v934
        %v936 = vlaneseq
        %v937 = vshrl.u32 %v936, 7
        %v938 = vsub.s32 %v935, %v937
        %v939 = vrot.slane %v931, %v938
        %v941 = vunpack.c.l.s4 1934713408
        %v942 = vunpack.c.0.s8 %v941
        %v943 = vlaneseq
        %v944 = vshrl.u32 %v943, 7
        %v945 = vsub.s32 %v942, %v944
        %v946 = vrot.slane %v932, %v945
        %v947 = vcombine.low %v923, %v939
        %v948 = vcombine.high %v923, %v939
        %v949 = vcombine.low %v930, %v946
        %v950 = vcombine.high %v930, %v946
        %952 = vrot.lane.b32.xlu0 %v717, 120
        %v953 = vpop.permute.xlu0 %952
        %955 = vrot.lane.b32.xlu0 %v717, 112
        %v956 = vpop.permute.xlu0 %955
        %958 = vrot.lane.b32.xlu0 %v717, 104
        %v959 = vpop.permute.xlu0 %958
        %v961 = vcombine.low %v717, %v956
        %v962 = vcombine.high %v717, %v956
        %v964 = vunpack.c.l.s4 1983009808
        %v965 = vunpack.c.0.s8 %v964
        %v966 = vlaneseq
        %v967 = vshrl.u32 %v966, 7
        %v968 = vsub.s32 %v965, %v967
        %v969 = vrot.slane %v961, %v968
        %v971 = vunpack.c.l.s4 1983009808
        %v972 = vunpack.c.0.s8 %v971
        %v973 = vlaneseq
        %v974 = vshrl.u32 %v973, 7
        %v975 = vsub.s32 %v972, %v974
        %v976 = vrot.slane %v962, %v975
        %v977 = vcombine.low %v953, %v959
        %v978 = vcombine.high %v953, %v959
        %v980 = vunpack.c.l.s4 1983009808
        %v981 = vunpack.c.0.s8 %v980
        %v982 = vlaneseq
        %v983 = vshrl.u32 %v982, 7
        %v984 = vsub.s32 %v981, %v983
        %v985 = vrot.slane %v977, %v984
        %v987 = vunpack.c.l.s4 1983009808
        %v988 = vunpack.c.0.s8 %v987
        %v989 = vlaneseq
        %v990 = vshrl.u32 %v989, 7
        %v991 = vsub.s32 %v988, %v990
        %v992 = vrot.slane %v978, %v991
        %v993 = vcombine.low %v969, %v985
        %v994 = vcombine.high %v969, %v985
        %v996 = vunpack.c.l.s4 1934713408
        %v997 = vunpack.c.0.s8 %v996
        %v998 = vlaneseq
        %v999 = vshrl.u32 %v998, 7
        %v1000 = vsub.s32 %v997, %v999
        %v1001 = vrot.slane %v993, %v1000
        %v1003 = vunpack.c.l.s4 1934713408
        %v1004 = vunpack.c.0.s8 %v1003
        %v1005 = vlaneseq
        %v1006 = vshrl.u32 %v1005, 7
        %v1007 = vsub.s32 %v1004, %v1006
        %v1008 = vrot.slane %v994, %v1007
        %v1009 = vcombine.low %v976, %v992
        %v1010 = vcombine.high %v976, %v992
        %v1012 = vunpack.c.l.s4 1934713408
        %v1013 = vunpack.c.0.s8 %v1012
        %v1014 = vlaneseq
        %v1015 = vshrl.u32 %v1014, 7
        %v1016 = vsub.s32 %v1013, %v1015
        %v1017 = vrot.slane %v1009, %v1016
        %v1019 = vunpack.c.l.s4 1934713408
        %v1020 = vunpack.c.0.s8 %v1019
        %v1021 = vlaneseq
        %v1022 = vshrl.u32 %v1021, 7
        %v1023 = vsub.s32 %v1020, %v1022
        %v1024 = vrot.slane %v1010, %v1023
        %v1025 = vcombine.high %v1001, 0.0
        %v1026 = vcombine.high %v1008, 0.0
        %v1027 = vcombine.high %v1017, 0.0
        %v1028 = vcombine.high %v1024, 0.0
        %v1029 = vcombine.low %v1001, %v1008
        %v1031 = vunpack.c.l.s4 1983009808
        %v1032 = vunpack.c.0.s8 %v1031
        %v1033 = vlaneseq
        %v1034 = vshrl.u32 %v1033, 7
        %v1035 = vsub.s32 %v1032, %v1034
        %v1036 = vrot.slane %v1029, %v1035
        %v1037 = vcombine.low %v1025, %v1026
        %v1039 = vunpack.c.l.s4 1983009808
        %v1040 = vunpack.c.0.s8 %v1039
        %v1041 = vlaneseq
        %v1042 = vshrl.u32 %v1041, 7
        %v1043 = vsub.s32 %v1040, %v1042
        %v1044 = vrot.slane %v1037, %v1043
        %v1045 = vcombine.low %v1017, %v1024
        %v1047 = vunpack.c.l.s4 1983009808
        %v1048 = vunpack.c.0.s8 %v1047
        %v1049 = vlaneseq
        %v1050 = vshrl.u32 %v1049, 7
        %v1051 = vsub.s32 %v1048, %v1050
        %v1052 = vrot.slane %v1045, %v1051
        %v1053 = vcombine.low %v1027, %v1028
        %v1055 = vunpack.c.l.s4 1983009808
        %v1056 = vunpack.c.0.s8 %v1055
        %v1057 = vlaneseq
        %v1058 = vshrl.u32 %v1057, 7
        %v1059 = vsub.s32 %v1056, %v1058
        %v1060 = vrot.slane %v1053, %v1059
        %v1061 = vcombine.low %v1036, %v1044
        %v1062 = vcombine.high %v1036, %v1044
        %v1064 = vunpack.c.l.s4 1934713408
        %v1065 = vunpack.c.0.s8 %v1064
        %v1066 = vlaneseq
        %v1067 = vshrl.u32 %v1066, 7
        %v1068 = vsub.s32 %v1065, %v1067
        %v1069 = vrot.slane %v1061, %v1068
        %v1071 = vunpack.c.l.s4 1934713408
        %v1072 = vunpack.c.0.s8 %v1071
        %v1073 = vlaneseq
        %v1074 = vshrl.u32 %v1073, 7
        %v1075 = vsub.s32 %v1072, %v1074
        %v1076 = vrot.slane %v1062, %v1075
        %v1077 = vcombine.low %v1052, %v1060
        %v1078 = vcombine.high %v1052, %v1060
        %v1080 = vunpack.c.l.s4 1934713408
        %v1081 = vunpack.c.0.s8 %v1080
        %v1082 = vlaneseq
        %v1083 = vshrl.u32 %v1082, 7
        %v1084 = vsub.s32 %v1081, %v1083
        %v1085 = vrot.slane %v1077, %v1084
        %v1087 = vunpack.c.l.s4 1934713408
        %v1088 = vunpack.c.0.s8 %v1087
        %v1089 = vlaneseq
        %v1090 = vshrl.u32 %v1089, 7
        %v1091 = vsub.s32 %v1088, %v1090
        %v1092 = vrot.slane %v1078, %v1091
        %v1093 = vcombine.low %v1069, %v1085
        %v1094 = vcombine.high %v1069, %v1085
        %v1095 = vcombine.low %v1076, %v1092
        %v1096 = vcombine.high %v1076, %v1092
        %1098 = vrot.lane.b32.xlu0 %v801, 120
        %v1099 = vpop.permute.xlu0 %1098
        %1101 = vrot.lane.b32.xlu0 %v801, 112
        %v1102 = vpop.permute.xlu0 %1101
        %1104 = vrot.lane.b32.xlu0 %v801, 104
        %v1105 = vpop.permute.xlu0 %1104
        %v1107 = vcombine.low %v801, %v1102
        %v1108 = vcombine.high %v801, %v1102
        %v1110 = vunpack.c.l.s4 1983009808
        %v1111 = vunpack.c.0.s8 %v1110
        %v1112 = vlaneseq
        %v1113 = vshrl.u32 %v1112, 7
        %v1114 = vsub.s32 %v1111, %v1113
        %v1115 = vrot.slane %v1107, %v1114
        %v1117 = vunpack.c.l.s4 1983009808
        %v1118 = vunpack.c.0.s8 %v1117
        %v1119 = vlaneseq
        %v1120 = vshrl.u32 %v1119, 7
        %v1121 = vsub.s32 %v1118, %v1120
        %v1122 = vrot.slane %v1108, %v1121
        %v1123 = vcombine.low %v1099, %v1105
        %v1124 = vcombine.high %v1099, %v1105
        %v1126 = vunpack.c.l.s4 1983009808
        %v1127 = vunpack.c.0.s8 %v1126
        %v1128 = vlaneseq
        %v1129 = vshrl.u32 %v1128, 7
        %v1130 = vsub.s32 %v1127, %v1129
        %v1131 = vrot.slane %v1123, %v1130
        %v1133 = vunpack.c.l.s4 1983009808
        %v1134 = vunpack.c.0.s8 %v1133
        %v1135 = vlaneseq
        %v1136 = vshrl.u32 %v1135, 7
        %v1137 = vsub.s32 %v1134, %v1136
        %v1138 = vrot.slane %v1124, %v1137
        %v1139 = vcombine.low %v1115, %v1131
        %v1140 = vcombine.high %v1115, %v1131
        %v1142 = vunpack.c.l.s4 1934713408
        %v1143 = vunpack.c.0.s8 %v1142
        %v1144 = vlaneseq
        %v1145 = vshrl.u32 %v1144, 7
        %v1146 = vsub.s32 %v1143, %v1145
        %v1147 = vrot.slane %v1139, %v1146
        %v1149 = vunpack.c.l.s4 1934713408
        %v1150 = vunpack.c.0.s8 %v1149
        %v1151 = vlaneseq
        %v1152 = vshrl.u32 %v1151, 7
        %v1153 = vsub.s32 %v1150, %v1152
        %v1154 = vrot.slane %v1140, %v1153
        %v1155 = vcombine.low %v1122, %v1138
        %v1156 = vcombine.high %v1122, %v1138
        %v1158 = vunpack.c.l.s4 1934713408
        %v1159 = vunpack.c.0.s8 %v1158
        %v1160 = vlaneseq
        %v1161 = vshrl.u32 %v1160, 7
        %v1162 = vsub.s32 %v1159, %v1161
        %v1163 = vrot.slane %v1155, %v1162
        %v1165 = vunpack.c.l.s4 1934713408
        %v1166 = vunpack.c.0.s8 %v1165
        %v1167 = vlaneseq
        %v1168 = vshrl.u32 %v1167, 7
        %v1169 = vsub.s32 %v1166, %v1168
        %v1170 = vrot.slane %v1156, %v1169
        %v1171 = vcombine.high %v1147, 0.0
        %v1172 = vcombine.high %v1154, 0.0
        %v1173 = vcombine.high %v1163, 0.0
        %v1174 = vcombine.high %v1170, 0.0
        %v1175 = vcombine.low %v1147, %v1154
        %v1177 = vunpack.c.l.s4 1983009808
        %v1178 = vunpack.c.0.s8 %v1177
        %v1179 = vlaneseq
        %v1180 = vshrl.u32 %v1179, 7
        %v1181 = vsub.s32 %v1178, %v1180
        %v1182 = vrot.slane %v1175, %v1181
        %v1183 = vcombine.low %v1171, %v1172
        %v1185 = vunpack.c.l.s4 1983009808
        %v1186 = vunpack.c.0.s8 %v1185
        %v1187 = vlaneseq
        %v1188 = vshrl.u32 %v1187, 7
        %v1189 = vsub.s32 %v1186, %v1188
        %v1190 = vrot.slane %v1183, %v1189
        %v1191 = vcombine.low %v1163, %v1170
        %v1193 = vunpack.c.l.s4 1983009808
        %v1194 = vunpack.c.0.s8 %v1193
        %v1195 = vlaneseq
        %v1196 = vshrl.u32 %v1195, 7
        %v1197 = vsub.s32 %v1194, %v1196
        %v1198 = vrot.slane %v1191, %v1197
        %v1199 = vcombine.low %v1173, %v1174
        %v1201 = vunpack.c.l.s4 1983009808
        %v1202 = vunpack.c.0.s8 %v1201
        %v1203 = vlaneseq
        %v1204 = vshrl.u32 %v1203, 7
        %v1205 = vsub.s32 %v1202, %v1204
        %v1206 = vrot.slane %v1199, %v1205
        %v1207 = vcombine.low %v1182, %v1190
        %v1208 = vcombine.high %v1182, %v1190
        %v1210 = vunpack.c.l.s4 1934713408
        %v1211 = vunpack.c.0.s8 %v1210
        %v1212 = vlaneseq
        %v1213 = vshrl.u32 %v1212, 7
        %v1214 = vsub.s32 %v1211, %v1213
        %v1215 = vrot.slane %v1207, %v1214
        %v1217 = vunpack.c.l.s4 1934713408
        %v1218 = vunpack.c.0.s8 %v1217
        %v1219 = vlaneseq
        %v1220 = vshrl.u32 %v1219, 7
        %v1221 = vsub.s32 %v1218, %v1220
        %v1222 = vrot.slane %v1208, %v1221
        %v1223 = vcombine.low %v1198, %v1206
        %v1224 = vcombine.high %v1198, %v1206
        %v1226 = vunpack.c.l.s4 1934713408
        %v1227 = vunpack.c.0.s8 %v1226
        %v1228 = vlaneseq
        %v1229 = vshrl.u32 %v1228, 7
        %v1230 = vsub.s32 %v1227, %v1229
        %v1231 = vrot.slane %v1223, %v1230
        %v1233 = vunpack.c.l.s4 1934713408
        %v1234 = vunpack.c.0.s8 %v1233
        %v1235 = vlaneseq
        %v1236 = vshrl.u32 %v1235, 7
        %v1237 = vsub.s32 %v1234, %v1236
        %v1238 = vrot.slane %v1224, %v1237
        %v1239 = vcombine.low %v1215, %v1231
        %v1240 = vcombine.high %v1215, %v1231
        %v1241 = vcombine.low %v1222, %v1238
        %v1242 = vcombine.high %v1222, %v1238
        %vm1243 = vcmask 64512
        %v1245 = vsel %vm1243, %v947, 0
        %v1248 = vsel %vm1243, %v1093, 0
        %1250 = vmatprep.subr.mxu0 0.0
        %1251 = vmatpush1.xpose.msra.mxu0 %v1248
        %1252 = vmatprep.subr.mxu0 0.0
        %1253 = vmatpush1.xpose.msra.mxu0 0.0
        %1254 = vmatprep.subr.mxu0 0.0
        %1255 = vmatpush1.xpose.msra.mxu0 0.0
        %1256 = vmatprep.subr.mxu0 0.0
        %1257 = vmatpush1.xpose.msra.mxu0 0.0
        %1258 = vmatprep.subr.mxu0 0.0
        %1259 = vmatpush1.xpose.msra.mxu0 0.0
        %1260 = vmatprep.subr.mxu0 0.0
        %1261 = vmatpush1.xpose.msra.mxu0 0.0
        %1262 = vmatprep.subr.mxu0 0.0
        %1263 = vmatpush1.xpose.msra.mxu0 0.0
        %1264 = vmatprep.subr.mxu0 0.0
        %1265 = vmatpush1.xpose.msra.mxu0 0.0
        %1266 = vmatprep.subr.mxu0 0.0
        %1267 = vmatpush1.xpose.msra.mxu0 0.0
        %1268 = vmatprep.subr.mxu0 0.0
        %1269 = vmatpush1.xpose.msra.mxu0 0.0
        %1270 = vmatprep.subr.mxu0 0.0
        %1271 = vmatpush1.xpose.msra.mxu0 0.0
        %1272 = vmatprep.subr.mxu0 0.0
        %1273 = vmatpush1.xpose.msra.mxu0 0.0
        %1274 = vmatprep.subr.mxu0 0.0
        %1275 = vmatpush1.xpose.msra.mxu0 0.0
        %1276 = vmatprep.subr.mxu0 0.0
        %1277 = vmatpush1.xpose.msra.mxu0 0.0
        %1278 = vmatprep.subr.mxu0 0.0
        %1279 = vmatpush1.xpose.msra.mxu0 0.0
        %1280 = vmatprep.subr.mxu0 0.0
        %1281 = vmatpush1.xpose.msra.mxu0 0.0
        %1282 = vmatprep.subr.mxu0 0.0
        %1283 = vmatpush1.xpose.msra.mxu0 0.0
        %1284 = vmatprep.subr.mxu0 0.0
        %1285 = vmatpush1.xpose.msra.mxu0 0.0
        %1286 = vmatprep.subr.mxu0 0.0
        %1287 = vmatpush1.xpose.msra.mxu0 0.0
        %1288 = vmatprep.subr.mxu0 0.0
        %1289 = vmatpush1.xpose.msra.mxu0 0.0
        %1290 = vmatprep.subr.mxu0 0.0
        %1291 = vmatpush1.xpose.msra.mxu0 0.0
        %1292 = vmatprep.subr.mxu0 0.0
        %1293 = vmatpush1.xpose.msra.mxu0 0.0
        %1294 = vmatprep.subr.mxu0 0.0
        %1295 = vmatpush1.xpose.msra.mxu0 0.0
        %1296 = vmatprep.subr.mxu0 0.0
        %1297 = vmatpush1.xpose.msra.mxu0 0.0
        %1298 = vmatprep.subr.mxu0 0.0
        %1299 = vmatpush1.xpose.msra.mxu0 0.0
        %1300 = vmatprep.subr.mxu0 0.0
        %1301 = vmatpush1.xpose.msra.mxu0 0.0
        %1302 = vmatprep.subr.mxu0 0.0
        %1303 = vmatpush1.xpose.msra.mxu0 0.0
        %1304 = vmatprep.subr.mxu0 0.0
        %1305 = vmatpush1.xpose.msra.mxu0 0.0
        %1306 = vmatprep.subr.mxu0 0.0
        %1307 = vmatpush1.xpose.msra.mxu0 0.0
        %1308 = vmatprep.subr.mxu0 0.0
        %1309 = vmatpush1.xpose.msra.mxu0 0.0
        %1310 = vmatprep.subr.mxu0 0.0
        %1311 = vmatpush1.xpose.msra.mxu0 0.0
        %1312 = vmatprep.subr.mxu0 0.0
        %1313 = vmatpush1.xpose.msra.mxu0 0.0
        %1314 = vmatprep.mubr.f32.mxu0 0.0
        %1315 = vmatmul.mubr.f32.gmra.mrb[0].mxu0 %v1245
        %v1316 = vpop.f32.mrb[0].mxu0
        %v1317 = vadd.f32 0.0, %v1316
        %v1318 = vpop.f32.mrb[0].mxu0
        %1319 = vdwg.mxu0
        %v1321 = vsel %vm1243, %v948, 0
        %v1324 = vsel %vm1243, %v1094, 0
        %1326 = vmatprep.subr.mxu0 0.0
        %1327 = vmatpush1.xpose.msra.mxu0 %v1324
        %1328 = vmatprep.subr.mxu0 0.0
        %1329 = vmatpush1.xpose.msra.mxu0 0.0
        %1330 = vmatprep.subr.mxu0 0.0
        %1331 = vmatpush1.xpose.msra.mxu0 0.0
        %1332 = vmatprep.subr.mxu0 0.0
        %1333 = vmatpush1.xpose.msra.mxu0 0.0
        %1334 = vmatprep.subr.mxu0 0.0
        %1335 = vmatpush1.xpose.msra.mxu0 0.0
        %1336 = vmatprep.subr.mxu0 0.0
        %1337 = vmatpush1.xpose.msra.mxu0 0.0
        %1338 = vmatprep.subr.mxu0 0.0
        %1339 = vmatpush1.xpose.msra.mxu0 0.0
        %1340 = vmatprep.subr.mxu0 0.0
        %1341 = vmatpush1.xpose.msra.mxu0 0.0
        %1342 = vmatprep.subr.mxu0 0.0
        %1343 = vmatpush1.xpose.msra.mxu0 0.0
        %1344 = vmatprep.subr.mxu0 0.0
        %1345 = vmatpush1.xpose.msra.mxu0 0.0
        %1346 = vmatprep.subr.mxu0 0.0
        %1347 = vmatpush1.xpose.msra.mxu0 0.0
        %1348 = vmatprep.subr.mxu0 0.0
        %1349 = vmatpush1.xpose.msra.mxu0 0.0
        %1350 = vmatprep.subr.mxu0 0.0
        %1351 = vmatpush1.xpose.msra.mxu0 0.0
        %1352 = vmatprep.subr.mxu0 0.0
        %1353 = vmatpush1.xpose.msra.mxu0 0.0
        %1354 = vmatprep.subr.mxu0 0.0
        %1355 = vmatpush1.xpose.msra.mxu0 0.0
        %1356 = vmatprep.subr.mxu0 0.0
        %1357 = vmatpush1.xpose.msra.mxu0 0.0
        %1358 = vmatprep.subr.mxu0 0.0
        %1359 = vmatpush1.xpose.msra.mxu0 0.0
        %1360 = vmatprep.subr.mxu0 0.0
        %1361 = vmatpush1.xpose.msra.mxu0 0.0
        %1362 = vmatprep.subr.mxu0 0.0
        %1363 = vmatpush1.xpose.msra.mxu0 0.0
        %1364 = vmatprep.subr.mxu0 0.0
        %1365 = vmatpush1.xpose.msra.mxu0 0.0
        %1366 = vmatprep.subr.mxu0 0.0
        %1367 = vmatpush1.xpose.msra.mxu0 0.0
        %1368 = vmatprep.subr.mxu0 0.0
        %1369 = vmatpush1.xpose.msra.mxu0 0.0
        %1370 = vmatprep.subr.mxu0 0.0
        %1371 = vmatpush1.xpose.msra.mxu0 0.0
        %1372 = vmatprep.subr.mxu0 0.0
        %1373 = vmatpush1.xpose.msra.mxu0 0.0
        %1374 = vmatprep.subr.mxu0 0.0
        %1375 = vmatpush1.xpose.msra.mxu0 0.0
        %1376 = vmatprep.subr.mxu0 0.0
        %1377 = vmatpush1.xpose.msra.mxu0 0.0
        %1378 = vmatprep.subr.mxu0 0.0
        %1379 = vmatpush1.xpose.msra.mxu0 0.0
        %1380 = vmatprep.subr.mxu0 0.0
        %1381 = vmatpush1.xpose.msra.mxu0 0.0
        %1382 = vmatprep.subr.mxu0 0.0
        %1383 = vmatpush1.xpose.msra.mxu0 0.0
        %1384 = vmatprep.subr.mxu0 0.0
        %1385 = vmatpush1.xpose.msra.mxu0 0.0
        %1386 = vmatprep.subr.mxu0 0.0
        %1387 = vmatpush1.xpose.msra.mxu0 0.0
        %1388 = vmatprep.subr.mxu0 0.0
        %1389 = vmatpush1.xpose.msra.mxu0 0.0
        %1390 = vmatprep.mubr.f32.mxu0 0.0
        %1391 = vmatmul.mubr.f32.gmra.mrb[0].mxu0 %v1321
        %v1392 = vpop.f32.mrb[0].mxu0
        %v1393 = vadd.f32 0.0, %v1392
        %v1394 = vpop.f32.mrb[0].mxu0
        %1395 = vdwg.mxu0
        %v1397 = vsel %vm1243, %v949, 0
        %v1400 = vsel %vm1243, %v1095, 0
        %1402 = vmatprep.subr.mxu0 0.0
        %1403 = vmatpush1.xpose.msra.mxu0 %v1400
        %1404 = vmatprep.subr.mxu0 0.0
        %1405 = vmatpush1.xpose.msra.mxu0 0.0
        %1406 = vmatprep.subr.mxu0 0.0
        %1407 = vmatpush1.xpose.msra.mxu0 0.0
        %1408 = vmatprep.subr.mxu0 0.0
        %1409 = vmatpush1.xpose.msra.mxu0 0.0
        %1410 = vmatprep.subr.mxu0 0.0
        %1411 = vmatpush1.xpose.msra.mxu0 0.0
        %1412 = vmatprep.subr.mxu0 0.0
        %1413 = vmatpush1.xpose.msra.mxu0 0.0
        %1414 = vmatprep.subr.mxu0 0.0
        %1415 = vmatpush1.xpose.msra.mxu0 0.0
        %1416 = vmatprep.subr.mxu0 0.0
        %1417 = vmatpush1.xpose.msra.mxu0 0.0
        %1418 = vmatprep.subr.mxu0 0.0
        %1419 = vmatpush1.xpose.msra.mxu0 0.0
        %1420 = vmatprep.subr.mxu0 0.0
        %1421 = vmatpush1.xpose.msra.mxu0 0.0
        %1422 = vmatprep.subr.mxu0 0.0
        %1423 = vmatpush1.xpose.msra.mxu0 0.0
        %1424 = vmatprep.subr.mxu0 0.0
        %1425 = vmatpush1.xpose.msra.mxu0 0.0
        %1426 = vmatprep.subr.mxu0 0.0
        %1427 = vmatpush1.xpose.msra.mxu0 0.0
        %1428 = vmatprep.subr.mxu0 0.0
        %1429 = vmatpush1.xpose.msra.mxu0 0.0
        %1430 = vmatprep.subr.mxu0 0.0
        %1431 = vmatpush1.xpose.msra.mxu0 0.0
        %1432 = vmatprep.subr.mxu0 0.0
        %1433 = vmatpush1.xpose.msra.mxu0 0.0
        %1434 = vmatprep.subr.mxu0 0.0
        %1435 = vmatpush1.xpose.msra.mxu0 0.0
        %1436 = vmatprep.subr.mxu0 0.0
        %1437 = vmatpush1.xpose.msra.mxu0 0.0
        %1438 = vmatprep.subr.mxu0 0.0
        %1439 = vmatpush1.xpose.msra.mxu0 0.0
        %1440 = vmatprep.subr.mxu0 0.0
        %1441 = vmatpush1.xpose.msra.mxu0 0.0
        %1442 = vmatprep.subr.mxu0 0.0
        %1443 = vmatpush1.xpose.msra.mxu0 0.0
        %1444 = vmatprep.subr.mxu0 0.0
        %1445 = vmatpush1.xpose.msra.mxu0 0.0
        %1446 = vmatprep.subr.mxu0 0.0
        %1447 = vmatpush1.xpose.msra.mxu0 0.0
        %1448 = vmatprep.subr.mxu0 0.0
        %1449 = vmatpush1.xpose.msra.mxu0 0.0
        %1450 = vmatprep.subr.mxu0 0.0
        %1451 = vmatpush1.xpose.msra.mxu0 0.0
        %1452 = vmatprep.subr.mxu0 0.0
        %1453 = vmatpush1.xpose.msra.mxu0 0.0
        %1454 = vmatprep.subr.mxu0 0.0
        %1455 = vmatpush1.xpose.msra.mxu0 0.0
        %1456 = vmatprep.subr.mxu0 0.0
        %1457 = vmatpush1.xpose.msra.mxu0 0.0
        %1458 = vmatprep.subr.mxu0 0.0
        %1459 = vmatpush1.xpose.msra.mxu0 0.0
        %1460 = vmatprep.subr.mxu0 0.0
        %1461 = vmatpush1.xpose.msra.mxu0 0.0
        %1462 = vmatprep.subr.mxu0 0.0
        %1463 = vmatpush1.xpose.msra.mxu0 0.0
        %1464 = vmatprep.subr.mxu0 0.0
        %1465 = vmatpush1.xpose.msra.mxu0 0.0
        %1466 = vmatprep.mubr.f32.mxu0 0.0
        %1467 = vmatmul.mubr.f32.gmra.mrb[0].mxu0 %v1397
        %v1468 = vpop.f32.mrb[0].mxu0
        %v1469 = vadd.f32 0.0, %v1468
        %v1470 = vpop.f32.mrb[0].mxu0
        %1471 = vdwg.mxu0
        %v1473 = vsel %vm1243, %v950, 0
        %v1476 = vsel %vm1243, %v1096, 0
        %1478 = vmatprep.subr.mxu0 0.0
        %1479 = vmatpush1.xpose.msra.mxu0 %v1476
        %1480 = vmatprep.subr.mxu0 0.0
        %1481 = vmatpush1.xpose.msra.mxu0 0.0
        %1482 = vmatprep.subr.mxu0 0.0
        %1483 = vmatpush1.xpose.msra.mxu0 0.0
        %1484 = vmatprep.subr.mxu0 0.0
        %1485 = vmatpush1.xpose.msra.mxu0 0.0
        %1486 = vmatprep.subr.mxu0 0.0
        %1487 = vmatpush1.xpose.msra.mxu0 0.0
        %1488 = vmatprep.subr.mxu0 0.0
        %1489 = vmatpush1.xpose.msra.mxu0 0.0
        %1490 = vmatprep.subr.mxu0 0.0
        %1491 = vmatpush1.xpose.msra.mxu0 0.0
        %1492 = vmatprep.subr.mxu0 0.0
        %1493 = vmatpush1.xpose.msra.mxu0 0.0
        %1494 = vmatprep.subr.mxu0 0.0
        %1495 = vmatpush1.xpose.msra.mxu0 0.0
        %1496 = vmatprep.subr.mxu0 0.0
        %1497 = vmatpush1.xpose.msra.mxu0 0.0
        %1498 = vmatprep.subr.mxu0 0.0
        %1499 = vmatpush1.xpose.msra.mxu0 0.0
        %1500 = vmatprep.subr.mxu0 0.0
        %1501 = vmatpush1.xpose.msra.mxu0 0.0
        %1502 = vmatprep.subr.mxu0 0.0
        %1503 = vmatpush1.xpose.msra.mxu0 0.0
        %1504 = vmatprep.subr.mxu0 0.0
        %1505 = vmatpush1.xpose.msra.mxu0 0.0
        %1506 = vmatprep.subr.mxu0 0.0
        %1507 = vmatpush1.xpose.msra.mxu0 0.0
        %1508 = vmatprep.subr.mxu0 0.0
        %1509 = vmatpush1.xpose.msra.mxu0 0.0
        %1510 = vmatprep.subr.mxu0 0.0
        %1511 = vmatpush1.xpose.msra.mxu0 0.0
        %1512 = vmatprep.subr.mxu0 0.0
        %1513 = vmatpush1.xpose.msra.mxu0 0.0
        %1514 = vmatprep.subr.mxu0 0.0
        %1515 = vmatpush1.xpose.msra.mxu0 0.0
        %1516 = vmatprep.subr.mxu0 0.0
        %1517 = vmatpush1.xpose.msra.mxu0 0.0
        %1518 = vmatprep.subr.mxu0 0.0
        %1519 = vmatpush1.xpose.msra.mxu0 0.0
        %1520 = vmatprep.subr.mxu0 0.0
        %1521 = vmatpush1.xpose.msra.mxu0 0.0
        %1522 = vmatprep.subr.mxu0 0.0
        %1523 = vmatpush1.xpose.msra.mxu0 0.0
        %1524 = vmatprep.subr.mxu0 0.0
        %1525 = vmatpush1.xpose.msra.mxu0 0.0
        %1526 = vmatprep.subr.mxu0 0.0
        %1527 = vmatpush1.xpose.msra.mxu0 0.0
        %1528 = vmatprep.subr.mxu0 0.0
        %1529 = vmatpush1.xpose.msra.mxu0 0.0
        %1530 = vmatprep.subr.mxu0 0.0
        %1531 = vmatpush1.xpose.msra.mxu0 0.0
        %1532 = vmatprep.subr.mxu0 0.0
        %1533 = vmatpush1.xpose.msra.mxu0 0.0
        %1534 = vmatprep.subr.mxu0 0.0
        %1535 = vmatpush1.xpose.msra.mxu0 0.0
        %1536 = vmatprep.subr.mxu0 0.0
        %1537 = vmatpush1.xpose.msra.mxu0 0.0
        %1538 = vmatprep.subr.mxu0 0.0
        %1539 = vmatpush1.xpose.msra.mxu0 0.0
        %1540 = vmatprep.subr.mxu0 0.0
        %1541 = vmatpush1.xpose.msra.mxu0 0.0
        %1542 = vmatprep.mubr.f32.mxu0 0.0
        %1543 = vmatmul.mubr.f32.gmra.mrb[0].mxu0 %v1473
        %v1544 = vpop.f32.mrb[0].mxu0
        %v1545 = vadd.f32 0.0, %v1544
        %v1546 = vpop.f32.mrb[0].mxu0
        %1547 = vdwg.mxu0
        %v1548 = vsel %vm1243, %v1317, -inf
        %1549 = vmax.xlane.f32.xlu0 %v1548
        %v1550 = vpop.xlane.xlu0 %1549
        %v1551 = vsel %vm1243, %v1393, -inf
        %1552 = vmax.xlane.f32.xlu0 %v1551
        %v1553 = vpop.xlane.xlu0 %1552
        %v1554 = vsel %vm1243, %v1469, -inf
        %1555 = vmax.xlane.f32.xlu0 %v1554
        %v1556 = vpop.xlane.xlu0 %1555
        %v1557 = vsel %vm1243, %v1545, -inf
        %1558 = vmax.xlane.f32.xlu0 %v1557
        %v1559 = vpop.xlane.xlu0 %1558
        %v1560 = vsub.f32 %v1317, %v1550
        %v1561 = vsub.f32 %v1393, %v1553
        %v1562 = vsub.f32 %v1469, %v1556
        %v1563 = vsub.f32 %v1545, %v1559
        %v1564 = vmul.f32 %v1560, 1.442695
        %v1565 = vpow.pop %v1564
        %v1566 = vmul.f32 %v1561, 1.442695
        %v1567 = vpow.pop %v1566
        %v1568 = vmul.f32 %v1562, 1.442695
        %v1569 = vpow.pop %v1568
        %v1570 = vmul.f32 %v1563, 1.442695
        %v1571 = vpow.pop %v1570
        %v1572 = vsel %vm1243, %v1565, 0.0
        %1573 = vadd.xlane.f32.xlu0 %v1572
        %v1574 = vpop.xlane.xlu0 %1573
        %v1575 = vsel %vm1243, %v1567, 0.0
        %1576 = vadd.xlane.f32.xlu0 %v1575
        %v1577 = vpop.xlane.xlu0 %1576
        %v1578 = vsel %vm1243, %v1569, 0.0
        %1579 = vadd.xlane.f32.xlu0 %v1578
        %v1580 = vpop.xlane.xlu0 %1579
        %v1581 = vsel %vm1243, %v1571, 0.0
        %1582 = vadd.xlane.f32.xlu0 %v1581
        %v1583 = vpop.xlane.xlu0 %1582
        %v1584 = vrcp.pop %v1574
        %v1585 = vrcp.pop %v1577
        %v1586 = vrcp.pop %v1580
        %v1587 = vrcp.pop %v1583
        %v1588 = vmul.f32 %v1565, %v1584
        %v1589 = vmul.f32 %v1567, %v1585
        %v1590 = vmul.f32 %v1569, %v1586
        %v1591 = vmul.f32 %v1571, %v1587
        %v1593 = vsel %vm1243, %v1588, 0
        %1595 = vmatprep.subr.mxu0 0.0
        %1596 = vmatpush1.msra.mxu0 %v1239
        %1597 = vmatprep.subr.mxu0 0.0
        %1598 = vmatpush1.msra.mxu0 0.0
        %1599 = vmatprep.subr.mxu0 0.0
        %1600 = vmatpush1.msra.mxu0 0.0
        %1601 = vmatprep.subr.mxu0 0.0
        %1602 = vmatpush1.msra.mxu0 0.0
        %1603 = vmatprep.subr.mxu0 0.0
        %1604 = vmatpush1.msra.mxu0 0.0
        %1605 = vmatprep.subr.mxu0 0.0
        %1606 = vmatpush1.msra.mxu0 0.0
        %1607 = vmatprep.subr.mxu0 0.0
        %1608 = vmatpush1.msra.mxu0 0.0
        %1609 = vmatprep.subr.mxu0 0.0
        %1610 = vmatpush1.msra.mxu0 0.0
        %1611 = vmatprep.subr.mxu0 0.0
        %1612 = vmatpush1.msra.mxu0 0.0
        %1613 = vmatprep.subr.mxu0 0.0
        %1614 = vmatpush1.msra.mxu0 0.0
        %1615 = vmatprep.subr.mxu0 0.0
        %1616 = vmatpush1.msra.mxu0 0.0
        %1617 = vmatprep.subr.mxu0 0.0
        %1618 = vmatpush1.msra.mxu0 0.0
        %1619 = vmatprep.subr.mxu0 0.0
        %1620 = vmatpush1.msra.mxu0 0.0
        %1621 = vmatprep.subr.mxu0 0.0
        %1622 = vmatpush1.msra.mxu0 0.0
        %1623 = vmatprep.subr.mxu0 0.0
        %1624 = vmatpush1.msra.mxu0 0.0
        %1625 = vmatprep.subr.mxu0 0.0
        %1626 = vmatpush1.msra.mxu0 0.0
        %1627 = vmatprep.subr.mxu0 0.0
        %1628 = vmatpush1.msra.mxu0 0.0
        %1629 = vmatprep.subr.mxu0 0.0
        %1630 = vmatpush1.msra.mxu0 0.0
        %1631 = vmatprep.subr.mxu0 0.0
        %1632 = vmatpush1.msra.mxu0 0.0
        %1633 = vmatprep.subr.mxu0 0.0
        %1634 = vmatpush1.msra.mxu0 0.0
        %1635 = vmatprep.subr.mxu0 0.0
        %1636 = vmatpush1.msra.mxu0 0.0
        %1637 = vmatprep.subr.mxu0 0.0
        %1638 = vmatpush1.msra.mxu0 0.0
        %1639 = vmatprep.subr.mxu0 0.0
        %1640 = vmatpush1.msra.mxu0 0.0
        %1641 = vmatprep.subr.mxu0 0.0
        %1642 = vmatpush1.msra.mxu0 0.0
        %1643 = vmatprep.subr.mxu0 0.0
        %1644 = vmatpush1.msra.mxu0 0.0
        %1645 = vmatprep.subr.mxu0 0.0
        %1646 = vmatpush1.msra.mxu0 0.0
        %1647 = vmatprep.subr.mxu0 0.0
        %1648 = vmatpush1.msra.mxu0 0.0
        %1649 = vmatprep.subr.mxu0 0.0
        %1650 = vmatpush1.msra.mxu0 0.0
        %1651 = vmatprep.subr.mxu0 0.0
        %1652 = vmatpush1.msra.mxu0 0.0
        %1653 = vmatprep.subr.mxu0 0.0
        %1654 = vmatpush1.msra.mxu0 0.0
        %1655 = vmatprep.subr.mxu0 0.0
        %1656 = vmatpush1.msra.mxu0 0.0
        %1657 = vmatprep.subr.mxu0 0.0
        %1658 = vmatpush1.msra.mxu0 0.0
        %1659 = vmatprep.mubr.f32.mxu0 0.0
        %1660 = vmatmul.mubr.f32.gmra.mrb[0].mxu0 %v1593
        %v1661 = vpop.f32.mrb[0].mxu0
        %v1662 = vadd.f32 0.0, %v1661
        %v1663 = vpop.f32.mrb[0].mxu0
        %1664 = vdwg.mxu0
        %v1666 = vsel %vm1243, %v1589, 0
        %1668 = vmatprep.subr.mxu0 0.0
        %1669 = vmatpush1.msra.mxu0 %v1240
        %1670 = vmatprep.subr.mxu0 0.0
        %1671 = vmatpush1.msra.mxu0 0.0
        %1672 = vmatprep.subr.mxu0 0.0
        %1673 = vmatpush1.msra.mxu0 0.0
        %1674 = vmatprep.subr.mxu0 0.0
        %1675 = vmatpush1.msra.mxu0 0.0
        %1676 = vmatprep.subr.mxu0 0.0
        %1677 = vmatpush1.msra.mxu0 0.0
        %1678 = vmatprep.subr.mxu0 0.0
        %1679 = vmatpush1.msra.mxu0 0.0
        %1680 = vmatprep.subr.mxu0 0.0
        %1681 = vmatpush1.msra.mxu0 0.0
        %1682 = vmatprep.subr.mxu0 0.0
        %1683 = vmatpush1.msra.mxu0 0.0
        %1684 = vmatprep.subr.mxu0 0.0
        %1685 = vmatpush1.msra.mxu0 0.0
        %1686 = vmatprep.subr.mxu0 0.0
        %1687 = vmatpush1.msra.mxu0 0.0
        %1688 = vmatprep.subr.mxu0 0.0
        %1689 = vmatpush1.msra.mxu0 0.0
        %1690 = vmatprep.subr.mxu0 0.0
        %1691 = vmatpush1.msra.mxu0 0.0
        %1692 = vmatprep.subr.mxu0 0.0
        %1693 = vmatpush1.msra.mxu0 0.0
        %1694 = vmatprep.subr.mxu0 0.0
        %1695 = vmatpush1.msra.mxu0 0.0
        %1696 = vmatprep.subr.mxu0 0.0
        %1697 = vmatpush1.msra.mxu0 0.0
        %1698 = vmatprep.subr.mxu0 0.0
        %1699 = vmatpush1.msra.mxu0 0.0
        %1700 = vmatprep.subr.mxu0 0.0
        %1701 = vmatpush1.msra.mxu0 0.0
        %1702 = vmatprep.subr.mxu0 0.0
        %1703 = vmatpush1.msra.mxu0 0.0
        %1704 = vmatprep.subr.mxu0 0.0
        %1705 = vmatpush1.msra.mxu0 0.0
        %1706 = vmatprep.subr.mxu0 0.0
        %1707 = vmatpush1.msra.mxu0 0.0
        %1708 = vmatprep.subr.mxu0 0.0
        %1709 = vmatpush1.msra.mxu0 0.0
        %1710 = vmatprep.subr.mxu0 0.0
        %1711 = vmatpush1.msra.mxu0 0.0
        %1712 = vmatprep.subr.mxu0 0.0
        %1713 = vmatpush1.msra.mxu0 0.0
        %1714 = vmatprep.subr.mxu0 0.0
        %1715 = vmatpush1.msra.mxu0 0.0
        %1716 = vmatprep.subr.mxu0 0.0
        %1717 = vmatpush1.msra.mxu0 0.0
        %1718 = vmatprep.subr.mxu0 0.0
        %1719 = vmatpush1.msra.mxu0 0.0
        %1720 = vmatprep.subr.mxu0 0.0
        %1721 = vmatpush1.msra.mxu0 0.0
        %1722 = vmatprep.subr.mxu0 0.0
        %1723 = vmatpush1.msra.mxu0 0.0
        %1724 = vmatprep.subr.mxu0 0.0
        %1725 = vmatpush1.msra.mxu0 0.0
        %1726 = vmatprep.subr.mxu0 0.0
        %1727 = vmatpush1.msra.mxu0 0.0
        %1728 = vmatprep.subr.mxu0 0.0
        %1729 = vmatpush1.msra.mxu0 0.0
        %1730 = vmatprep.subr.mxu0 0.0
        %1731 = vmatpush1.msra.mxu0 0.0
        %1732 = vmatprep.mubr.f32.mxu0 0.0
        %1733 = vmatmul.mubr.f32.gmra.mrb[0].mxu0 %v1666
        %v1734 = vpop.f32.mrb[0].mxu0
        %v1735 = vadd.f32 0.0, %v1734
        %v1736 = vpop.f32.mrb[0].mxu0
        %1737 = vdwg.mxu0
        %v1739 = vsel %vm1243, %v1590, 0
        %1741 = vmatprep.subr.mxu0 0.0
        %1742 = vmatpush1.msra.mxu0 %v1241
        %1743 = vmatprep.subr.mxu0 0.0
        %1744 = vmatpush1.msra.mxu0 0.0
        %1745 = vmatprep.subr.mxu0 0.0
        %1746 = vmatpush1.msra.mxu0 0.0
        %1747 = vmatprep.subr.mxu0 0.0
        %1748 = vmatpush1.msra.mxu0 0.0
        %1749 = vmatprep.subr.mxu0 0.0
        %1750 = vmatpush1.msra.mxu0 0.0
        %1751 = vmatprep.subr.mxu0 0.0
        %1752 = vmatpush1.msra.mxu0 0.0
        %1753 = vmatprep.subr.mxu0 0.0
        %1754 = vmatpush1.msra.mxu0 0.0
        %1755 = vmatprep.subr.mxu0 0.0
        %1756 = vmatpush1.msra.mxu0 0.0
        %1757 = vmatprep.subr.mxu0 0.0
        %1758 = vmatpush1.msra.mxu0 0.0
        %1759 = vmatprep.subr.mxu0 0.0
        %1760 = vmatpush1.msra.mxu0 0.0
        %1761 = vmatprep.subr.mxu0 0.0
        %1762 = vmatpush1.msra.mxu0 0.0
        %1763 = vmatprep.subr.mxu0 0.0
        %1764 = vmatpush1.msra.mxu0 0.0
        %1765 = vmatprep.subr.mxu0 0.0
        %1766 = vmatpush1.msra.mxu0 0.0
        %1767 = vmatprep.subr.mxu0 0.0
        %1768 = vmatpush1.msra.mxu0 0.0
        %1769 = vmatprep.subr.mxu0 0.0
        %1770 = vmatpush1.msra.mxu0 0.0
        %1771 = vmatprep.subr.mxu0 0.0
        %1772 = vmatpush1.msra.mxu0 0.0
        %1773 = vmatprep.subr.mxu0 0.0
        %1774 = vmatpush1.msra.mxu0 0.0
        %1775 = vmatprep.subr.mxu0 0.0
        %1776 = vmatpush1.msra.mxu0 0.0
        %1777 = vmatprep.subr.mxu0 0.0
        %1778 = vmatpush1.msra.mxu0 0.0
        %1779 = vmatprep.subr.mxu0 0.0
        %1780 = vmatpush1.msra.mxu0 0.0
        %1781 = vmatprep.subr.mxu0 0.0
        %1782 = vmatpush1.msra.mxu0 0.0
        %1783 = vmatprep.subr.mxu0 0.0
        %1784 = vmatpush1.msra.mxu0 0.0
        %1785 = vmatprep.subr.mxu0 0.0
        %1786 = vmatpush1.msra.mxu0 0.0
        %1787 = vmatprep.subr.mxu0 0.0
        %1788 = vmatpush1.msra.mxu0 0.0
        %1789 = vmatprep.subr.mxu0 0.0
        %1790 = vmatpush1.msra.mxu0 0.0
        %1791 = vmatprep.subr.mxu0 0.0
        %1792 = vmatpush1.msra.mxu0 0.0
        %1793 = vmatprep.subr.mxu0 0.0
        %1794 = vmatpush1.msra.mxu0 0.0
        %1795 = vmatprep.subr.mxu0 0.0
        %1796 = vmatpush1.msra.mxu0 0.0
        %1797 = vmatprep.subr.mxu0 0.0
        %1798 = vmatpush1.msra.mxu0 0.0
        %1799 = vmatprep.subr.mxu0 0.0
        %1800 = vmatpush1.msra.mxu0 0.0
        %1801 = vmatprep.subr.mxu0 0.0
        %1802 = vmatpush1.msra.mxu0 0.0
        %1803 = vmatprep.subr.mxu0 0.0
        %1804 = vmatpush1.msra.mxu0 0.0
        %1805 = vmatprep.mubr.f32.mxu0 0.0
        %1806 = vmatmul.mubr.f32.gmra.mrb[0].mxu0 %v1739
        %v1807 = vpop.f32.mrb[0].mxu0
        %v1808 = vadd.f32 0.0, %v1807
        %v1809 = vpop.f32.mrb[0].mxu0
        %1810 = vdwg.mxu0
        %v1812 = vsel %vm1243, %v1591, 0
        %1814 = vmatprep.subr.mxu0 0.0
        %1815 = vmatpush1.msra.mxu0 %v1242
        %1816 = vmatprep.subr.mxu0 0.0
        %1817 = vmatpush1.msra.mxu0 0.0
        %1818 = vmatprep.subr.mxu0 0.0
        %1819 = vmatpush1.msra.mxu0 0.0
        %1820 = vmatprep.subr.mxu0 0.0
        %1821 = vmatpush1.msra.mxu0 0.0
        %1822 = vmatprep.subr.mxu0 0.0
        %1823 = vmatpush1.msra.mxu0 0.0
        %1824 = vmatprep.subr.mxu0 0.0
        %1825 = vmatpush1.msra.mxu0 0.0
        %1826 = vmatprep.subr.mxu0 0.0
        %1827 = vmatpush1.msra.mxu0 0.0
        %1828 = vmatprep.subr.mxu0 0.0
        %1829 = vmatpush1.msra.mxu0 0.0
        %1830 = vmatprep.subr.mxu0 0.0
        %1831 = vmatpush1.msra.mxu0 0.0
        %1832 = vmatprep.subr.mxu0 0.0
        %1833 = vmatpush1.msra.mxu0 0.0
        %1834 = vmatprep.subr.mxu0 0.0
        %1835 = vmatpush1.msra.mxu0 0.0
        %1836 = vmatprep.subr.mxu0 0.0
        %1837 = vmatpush1.msra.mxu0 0.0
        %1838 = vmatprep.subr.mxu0 0.0
        %1839 = vmatpush1.msra.mxu0 0.0
        %1840 = vmatprep.subr.mxu0 0.0
        %1841 = vmatpush1.msra.mxu0 0.0
        %1842 = vmatprep.subr.mxu0 0.0
        %1843 = vmatpush1.msra.mxu0 0.0
        %1844 = vmatprep.subr.mxu0 0.0
        %1845 = vmatpush1.msra.mxu0 0.0
        %1846 = vmatprep.subr.mxu0 0.0
        %1847 = vmatpush1.msra.mxu0 0.0
        %1848 = vmatprep.subr.mxu0 0.0
        %1849 = vmatpush1.msra.mxu0 0.0
        %1850 = vmatprep.subr.mxu0 0.0
        %1851 = vmatpush1.msra.mxu0 0.0
        %1852 = vmatprep.subr.mxu0 0.0
        %1853 = vmatpush1.msra.mxu0 0.0
        %1854 = vmatprep.subr.mxu0 0.0
        %1855 = vmatpush1.msra.mxu0 0.0
        %1856 = vmatprep.subr.mxu0 0.0
        %1857 = vmatpush1.msra.mxu0 0.0
        %1858 = vmatprep.subr.mxu0 0.0
        %1859 = vmatpush1.msra.mxu0 0.0
        %1860 = vmatprep.subr.mxu0 0.0
        %1861 = vmatpush1.msra.mxu0 0.0
        %1862 = vmatprep.subr.mxu0 0.0
        %1863 = vmatpush1.msra.mxu0 0.0
        %1864 = vmatprep.subr.mxu0 0.0
        %1865 = vmatpush1.msra.mxu0 0.0
        %1866 = vmatprep.subr.mxu0 0.0
        %1867 = vmatpush1.msra.mxu0 0.0
        %1868 = vmatprep.subr.mxu0 0.0
        %1869 = vmatpush1.msra.mxu0 0.0
        %1870 = vmatprep.subr.mxu0 0.0
        %1871 = vmatpush1.msra.mxu0 0.0
        %1872 = vmatprep.subr.mxu0 0.0
        %1873 = vmatpush1.msra.mxu0 0.0
        %1874 = vmatprep.subr.mxu0 0.0
        %1875 = vmatpush1.msra.mxu0 0.0
        %1876 = vmatprep.subr.mxu0 0.0
        %1877 = vmatpush1.msra.mxu0 0.0
        %1878 = vmatprep.mubr.f32.mxu0 0.0
        %1879 = vmatmul.mubr.f32.gmra.mrb[0].mxu0 %v1812
        %v1880 = vpop.f32.mrb[0].mxu0
        %v1881 = vadd.f32 0.0, %v1880
        %v1882 = vpop.f32.mrb[0].mxu0
        %1883 = vdwg.mxu0
        %v1884 = vld [vmem:[#allocation13] sm:$0xff]
        %v1885 = vld [vmem:[#allocation13 + $0x8] sm:$0xff]
        %v1886 = vld [vmem:[#allocation13 + $0x10] sm:$0xff]
        %v1887 = vld [vmem:[#allocation13 + $0x18] sm:$0xff]
        %v1889 = vsel %vm1243, %v1662, 0
        %1891 = vmatprep.subr.mxu0 0.0
        %1892 = vmatpush1.msra.mxu0 %v1884
        %1893 = vmatprep.subr.mxu0 0.0
        %1894 = vmatpush1.msra.mxu0 0.0
        %1895 = vmatprep.subr.mxu0 0.0
        %1896 = vmatpush1.msra.mxu0 0.0
        %1897 = vmatprep.subr.mxu0 0.0
        %1898 = vmatpush1.msra.mxu0 0.0
        %1899 = vmatprep.subr.mxu0 0.0
        %1900 = vmatpush1.msra.mxu0 0.0
        %1901 = vmatprep.subr.mxu0 0.0
        %1902 = vmatpush1.msra.mxu0 0.0
        %1903 = vmatprep.subr.mxu0 0.0
        %1904 = vmatpush1.msra.mxu0 0.0
        %1905 = vmatprep.subr.mxu0 0.0
        %1906 = vmatpush1.msra.mxu0 0.0
        %1907 = vmatprep.subr.mxu0 0.0
        %1908 = vmatpush1.msra.mxu0 0.0
        %1909 = vmatprep.subr.mxu0 0.0
        %1910 = vmatpush1.msra.mxu0 0.0
        %1911 = vmatprep.subr.mxu0 0.0
        %1912 = vmatpush1.msra.mxu0 0.0
        %1913 = vmatprep.subr.mxu0 0.0
        %1914 = vmatpush1.msra.mxu0 0.0
        %1915 = vmatprep.subr.mxu0 0.0
        %1916 = vmatpush1.msra.mxu0 0.0
        %1917 = vmatprep.subr.mxu0 0.0
        %1918 = vmatpush1.msra.mxu0 0.0
        %1919 = vmatprep.subr.mxu0 0.0
        %1920 = vmatpush1.msra.mxu0 0.0
        %1921 = vmatprep.subr.mxu0 0.0
        %1922 = vmatpush1.msra.mxu0 0.0
        %1923 = vmatprep.subr.mxu0 0.0
        %1924 = vmatpush1.msra.mxu0 0.0
        %1925 = vmatprep.subr.mxu0 0.0
        %1926 = vmatpush1.msra.mxu0 0.0
        %1927 = vmatprep.subr.mxu0 0.0
        %1928 = vmatpush1.msra.mxu0 0.0
        %1929 = vmatprep.subr.mxu0 0.0
        %1930 = vmatpush1.msra.mxu0 0.0
        %1931 = vmatprep.subr.mxu0 0.0
        %1932 = vmatpush1.msra.mxu0 0.0
        %1933 = vmatprep.subr.mxu0 0.0
        %1934 = vmatpush1.msra.mxu0 0.0
        %1935 = vmatprep.subr.mxu0 0.0
        %1936 = vmatpush1.msra.mxu0 0.0
        %1937 = vmatprep.subr.mxu0 0.0
        %1938 = vmatpush1.msra.mxu0 0.0
        %1939 = vmatprep.subr.mxu0 0.0
        %1940 = vmatpush1.msra.mxu0 0.0
        %1941 = vmatprep.subr.mxu0 0.0
        %1942 = vmatpush1.msra.mxu0 0.0
        %1943 = vmatprep.subr.mxu0 0.0
        %1944 = vmatpush1.msra.mxu0 0.0
        %1945 = vmatprep.subr.mxu0 0.0
        %1946 = vmatpush1.msra.mxu0 0.0
        %1947 = vmatprep.subr.mxu0 0.0
        %1948 = vmatpush1.msra.mxu0 0.0
        %1949 = vmatprep.subr.mxu0 0.0
        %1950 = vmatpush1.msra.mxu0 0.0
        %1951 = vmatprep.subr.mxu0 0.0
        %1952 = vmatpush1.msra.mxu0 0.0
        %1953 = vmatprep.subr.mxu0 0.0
        %1954 = vmatpush1.msra.mxu0 0.0
        %1955 = vmatprep.mubr.f32.mxu0 0.0
        %1956 = vmatmul.mubr.f32.gmra.mrb[0].mxu0 %v1889
        %v1957 = vpop.f32.mrb[0].mxu0
        %v1958 = vadd.f32 0.0, %v1957
        %v1959 = vpop.f32.mrb[0].mxu0
        %1960 = vdwg.mxu0
        %v1962 = vsel %vm1243, %v1735, 0
        %1964 = vmatprep.subr.mxu0 0.0
        %1965 = vmatpush1.msra.mxu0 %v1885
        %1966 = vmatprep.subr.mxu0 0.0
        %1967 = vmatpush1.msra.mxu0 0.0
        %1968 = vmatprep.subr.mxu0 0.0
        %1969 = vmatpush1.msra.mxu0 0.0
        %1970 = vmatprep.subr.mxu0 0.0
        %1971 = vmatpush1.msra.mxu0 0.0
        %1972 = vmatprep.subr.mxu0 0.0
        %1973 = vmatpush1.msra.mxu0 0.0
        %1974 = vmatprep.subr.mxu0 0.0
        %1975 = vmatpush1.msra.mxu0 0.0
        %1976 = vmatprep.subr.mxu0 0.0
        %1977 = vmatpush1.msra.mxu0 0.0
        %1978 = vmatprep.subr.mxu0 0.0
        %1979 = vmatpush1.msra.mxu0 0.0
        %1980 = vmatprep.subr.mxu0 0.0
        %1981 = vmatpush1.msra.mxu0 0.0
        %1982 = vmatprep.subr.mxu0 0.0
        %1983 = vmatpush1.msra.mxu0 0.0
        %1984 = vmatprep.subr.mxu0 0.0
        %1985 = vmatpush1.msra.mxu0 0.0
        %1986 = vmatprep.subr.mxu0 0.0
        %1987 = vmatpush1.msra.mxu0 0.0
        %1988 = vmatprep.subr.mxu0 0.0
        %1989 = vmatpush1.msra.mxu0 0.0
        %1990 = vmatprep.subr.mxu0 0.0
        %1991 = vmatpush1.msra.mxu0 0.0
        %1992 = vmatprep.subr.mxu0 0.0
        %1993 = vmatpush1.msra.mxu0 0.0
        %1994 = vmatprep.subr.mxu0 0.0
        %1995 = vmatpush1.msra.mxu0 0.0
        %1996 = vmatprep.subr.mxu0 0.0
        %1997 = vmatpush1.msra.mxu0 0.0
        %1998 = vmatprep.subr.mxu0 0.0
        %1999 = vmatpush1.msra.mxu0 0.0
        %2000 = vmatprep.subr.mxu0 0.0
        %2001 = vmatpush1.msra.mxu0 0.0
        %2002 = vmatprep.subr.mxu0 0.0
        %2003 = vmatpush1.msra.mxu0 0.0
        %2004 = vmatprep.subr.mxu0 0.0
        %2005 = vmatpush1.msra.mxu0 0.0
        %2006 = vmatprep.subr.mxu0 0.0
        %2007 = vmatpush1.msra.mxu0 0.0
        %2008 = vmatprep.subr.mxu0 0.0
        %2009 = vmatpush1.msra.mxu0 0.0
        %2010 = vmatprep.subr.mxu0 0.0
        %2011 = vmatpush1.msra.mxu0 0.0
        %2012 = vmatprep.subr.mxu0 0.0
        %2013 = vmatpush1.msra.mxu0 0.0
        %2014 = vmatprep.subr.mxu0 0.0
        %2015 = vmatpush1.msra.mxu0 0.0
        %2016 = vmatprep.subr.mxu0 0.0
        %2017 = vmatpush1.msra.mxu0 0.0
        %2018 = vmatprep.subr.mxu0 0.0
        %2019 = vmatpush1.msra.mxu0 0.0
        %2020 = vmatprep.subr.mxu0 0.0
        %2021 = vmatpush1.msra.mxu0 0.0
        %2022 = vmatprep.subr.mxu0 0.0
        %2023 = vmatpush1.msra.mxu0 0.0
        %2024 = vmatprep.subr.mxu0 0.0
        %2025 = vmatpush1.msra.mxu0 0.0
        %2026 = vmatprep.subr.mxu0 0.0
        %2027 = vmatpush1.msra.mxu0 0.0
        %2028 = vmatprep.mubr.f32.mxu0 0.0
        %2029 = vmatmul.mubr.f32.gmra.mrb[0].mxu0 %v1962
        %v2030 = vpop.f32.mrb[0].mxu0
        %v2031 = vadd.f32 0.0, %v2030
        %v2032 = vpop.f32.mrb[0].mxu0
        %2033 = vdwg.mxu0
        %v2035 = vsel %vm1243, %v1808, 0
        %2037 = vmatprep.subr.mxu0 0.0
        %2038 = vmatpush1.msra.mxu0 %v1886
        %2039 = vmatprep.subr.mxu0 0.0
        %2040 = vmatpush1.msra.mxu0 0.0
        %2041 = vmatprep.subr.mxu0 0.0
        %2042 = vmatpush1.msra.mxu0 0.0
        %2043 = vmatprep.subr.mxu0 0.0
        %2044 = vmatpush1.msra.mxu0 0.0
        %2045 = vmatprep.subr.mxu0 0.0
        %2046 = vmatpush1.msra.mxu0 0.0
        %2047 = vmatprep.subr.mxu0 0.0
        %2048 = vmatpush1.msra.mxu0 0.0
        %2049 = vmatprep.subr.mxu0 0.0
        %2050 = vmatpush1.msra.mxu0 0.0
        %2051 = vmatprep.subr.mxu0 0.0
        %2052 = vmatpush1.msra.mxu0 0.0
        %2053 = vmatprep.subr.mxu0 0.0
        %2054 = vmatpush1.msra.mxu0 0.0
        %2055 = vmatprep.subr.mxu0 0.0
        %2056 = vmatpush1.msra.mxu0 0.0
        %2057 = vmatprep.subr.mxu0 0.0
        %2058 = vmatpush1.msra.mxu0 0.0
        %2059 = vmatprep.subr.mxu0 0.0
        %2060 = vmatpush1.msra.mxu0 0.0
        %2061 = vmatprep.subr.mxu0 0.0
        %2062 = vmatpush1.msra.mxu0 0.0
        %2063 = vmatprep.subr.mxu0 0.0
        %2064 = vmatpush1.msra.mxu0 0.0
        %2065 = vmatprep.subr.mxu0 0.0
        %2066 = vmatpush1.msra.mxu0 0.0
        %2067 = vmatprep.subr.mxu0 0.0
        %2068 = vmatpush1.msra.mxu0 0.0
        %2069 = vmatprep.subr.mxu0 0.0
        %2070 = vmatpush1.msra.mxu0 0.0
        %2071 = vmatprep.subr.mxu0 0.0
        %2072 = vmatpush1.msra.mxu0 0.0
        %2073 = vmatprep.subr.mxu0 0.0
        %2074 = vmatpush1.msra.mxu0 0.0
        %2075 = vmatprep.subr.mxu0 0.0
        %2076 = vmatpush1.msra.mxu0 0.0
        %2077 = vmatprep.subr.mxu0 0.0
        %2078 = vmatpush1.msra.mxu0 0.0
        %2079 = vmatprep.subr.mxu0 0.0
        %2080 = vmatpush1.msra.mxu0 0.0
        %2081 = vmatprep.subr.mxu0 0.0
        %2082 = vmatpush1.msra.mxu0 0.0
        %2083 = vmatprep.subr.mxu0 0.0
        %2084 = vmatpush1.msra.mxu0 0.0
        %2085 = vmatprep.subr.mxu0 0.0
        %2086 = vmatpush1.msra.mxu0 0.0
        %2087 = vmatprep.subr.mxu0 0.0
        %2088 = vmatpush1.msra.mxu0 0.0
        %2089 = vmatprep.subr.mxu0 0.0
        %2090 = vmatpush1.msra.mxu0 0.0
        %2091 = vmatprep.subr.mxu0 0.0
        %2092 = vmatpush1.msra.mxu0 0.0
        %2093 = vmatprep.subr.mxu0 0.0
        %2094 = vmatpush1.msra.mxu0 0.0
        %2095 = vmatprep.subr.mxu0 0.0
        %2096 = vmatpush1.msra.mxu0 0.0
        %2097 = vmatprep.subr.mxu0 0.0
        %2098 = vmatpush1.msra.mxu0 0.0
        %2099 = vmatprep.subr.mxu0 0.0
        %2100 = vmatpush1.msra.mxu0 0.0
        %2101 = vmatprep.mubr.f32.mxu0 0.0
        %2102 = vmatmul.mubr.f32.gmra.mrb[0].mxu0 %v2035
        %v2103 = vpop.f32.mrb[0].mxu0
        %v2104 = vadd.f32 0.0, %v2103
        %v2105 = vpop.f32.mrb[0].mxu0
        %2106 = vdwg.mxu0
        %v2108 = vsel %vm1243, %v1881, 0
        %2110 = vmatprep.subr.mxu0 0.0
        %2111 = vmatpush1.msra.mxu0 %v1887
        %2112 = vmatprep.subr.mxu0 0.0
        %2113 = vmatpush1.msra.mxu0 0.0
        %2114 = vmatprep.subr.mxu0 0.0
        %2115 = vmatpush1.msra.mxu0 0.0
        %2116 = vmatprep.subr.mxu0 0.0
        %2117 = vmatpush1.msra.mxu0 0.0
        %2118 = vmatprep.subr.mxu0 0.0
        %2119 = vmatpush1.msra.mxu0 0.0
        %2120 = vmatprep.subr.mxu0 0.0
        %2121 = vmatpush1.msra.mxu0 0.0
        %2122 = vmatprep.subr.mxu0 0.0
        %2123 = vmatpush1.msra.mxu0 0.0
        %2124 = vmatprep.subr.mxu0 0.0
        %2125 = vmatpush1.msra.mxu0 0.0
        %2126 = vmatprep.subr.mxu0 0.0
        %2127 = vmatpush1.msra.mxu0 0.0
        %2128 = vmatprep.subr.mxu0 0.0
        %2129 = vmatpush1.msra.mxu0 0.0
        %2130 = vmatprep.subr.mxu0 0.0
        %2131 = vmatpush1.msra.mxu0 0.0
        %2132 = vmatprep.subr.mxu0 0.0
        %2133 = vmatpush1.msra.mxu0 0.0
        %2134 = vmatprep.subr.mxu0 0.0
        %2135 = vmatpush1.msra.mxu0 0.0
        %2136 = vmatprep.subr.mxu0 0.0
        %2137 = vmatpush1.msra.mxu0 0.0
        %2138 = vmatprep.subr.mxu0 0.0
        %2139 = vmatpush1.msra.mxu0 0.0
        %2140 = vmatprep.subr.mxu0 0.0
        %2141 = vmatpush1.msra.mxu0 0.0
        %2142 = vmatprep.subr.mxu0 0.0
        %2143 = vmatpush1.msra.mxu0 0.0
        %2144 = vmatprep.subr.mxu0 0.0
        %2145 = vmatpush1.msra.mxu0 0.0
        %2146 = vmatprep.subr.mxu0 0.0
        %2147 = vmatpush1.msra.mxu0 0.0
        %2148 = vmatprep.subr.mxu0 0.0
        %2149 = vmatpush1.msra.mxu0 0.0
        %2150 = vmatprep.subr.mxu0 0.0
        %2151 = vmatpush1.msra.mxu0 0.0
        %2152 = vmatprep.subr.mxu0 0.0
        %2153 = vmatpush1.msra.mxu0 0.0
        %2154 = vmatprep.subr.mxu0 0.0
        %2155 = vmatpush1.msra.mxu0 0.0
        %2156 = vmatprep.subr.mxu0 0.0
        %2157 = vmatpush1.msra.mxu0 0.0
        %2158 = vmatprep.subr.mxu0 0.0
        %2159 = vmatpush1.msra.mxu0 0.0
        %2160 = vmatprep.subr.mxu0 0.0
        %2161 = vmatpush1.msra.mxu0 0.0
        %2162 = vmatprep.subr.mxu0 0.0
        %2163 = vmatpush1.msra.mxu0 0.0
        %2164 = vmatprep.subr.mxu0 0.0
        %2165 = vmatpush1.msra.mxu0 0.0
        %2166 = vmatprep.subr.mxu0 0.0
        %2167 = vmatpush1.msra.mxu0 0.0
        %2168 = vmatprep.subr.mxu0 0.0
        %2169 = vmatpush1.msra.mxu0 0.0
        %2170 = vmatprep.subr.mxu0 0.0
        %2171 = vmatpush1.msra.mxu0 0.0
        %2172 = vmatprep.subr.mxu0 0.0
        %2173 = vmatpush1.msra.mxu0 0.0
        %2174 = vmatprep.mubr.f32.mxu0 0.0
        %2175 = vmatmul.mubr.f32.gmra.mrb[0].mxu0 %v2108
        %v2176 = vpop.f32.mrb[0].mxu0
        %v2177 = vadd.f32 0.0, %v2176
        %v2178 = vpop.f32.mrb[0].mxu0
        %2179 = vdwg.mxu0
        %v2180 = vsel %vm562, %v1958, 0.0
        %v2181 = vsel %vm562, %v2031, 0.0
        %v2182 = vadd.f32 %v2180, %v2181
        %v2183 = vsel %vm562, %v2104, 0.0
        %v2184 = vadd.f32 %v2182, %v2183
        %v2185 = vsel %vm562, %v2177, 0.0
        %v2186 = vadd.f32 %v2184, %v2185
        %v2187 = vld [vmem:[%s10] sm:$0x1]
        %v2189 = vlaneseq
        %v2190 = vshrl.u32 %v2189, 7
        %v2191 = vsub.s32 0, %v2190
        %v2192 = vrot.slane %v2187, %v2191
        %v2194 = vadd.f32 %v2186, %v2192
        %2195 = vst.msk [vmem:[%s547] sm:$0xff] %vm562, %v2194
        %s2196 = sand.u32 %s303, 1
        %s2197 = scalar_lea.sflag [#allocation4], %s2196
        %s2198 = sand.u32 %s303, 1
        %s2199 = smul.addr %s2198, 8
        %s2200 = scalar_lea.vmem [#allocation14], %s2199
        // Predicated region
        $region93: #{tpu_custom_call.1} parent=63 // pred_check
          %p2201 = pneg %p313
        $region94: #{tpu_custom_call.1} parent=63 // pred_check_branch
          %2203 = sbr.rel (%p2201) target = $region96
        $region95: #{tpu_custom_call.1} parent=63 // pred_region
          %s2205 = ssub.s32 128, 128
          %2206 = vsyncadd %s2197, %s2205
          %s2207 = sadd.s32 %s38, %s37
          %s2208 = smul.addr %s2207, 128
          %s2209 = scalar_lea.hbm %s11, %s2208
          %s2211 = sshll.u32 %s2200, 4
          %s2212 = int_to_ptr.vmem [resolvable:$true] %s2211
          %2214 = dma.vmem_to_hbm [thread:$0]  %s2212, 128, %s2209, %s2197
        $region96: #{tpu_custom_call.1} parent=63 // pred_fallthru
          _
      $region64: #{tpu_custom_call.1} parent=5 // pred_fallthru
        _
      %p2215 = scmp.le.s32.totalorder 2, %s28
      // Predicated region
      $region97: #{tpu_custom_call.1} parent=5 // pred_check
        %p2216 = pneg %p2215
      $region98: #{tpu_custom_call.1} parent=5 // pred_check_branch
        %2218 = sbr.rel (%p2216) target = $region100
      $region99: #{tpu_custom_call.1} parent=5 // pred_region
        %s2219 = ssub.s32 %s28, 2
        // Predicated region
        $region101: #{tpu_custom_call.1} parent=99 // pred_check
          %p2220 = pneg %p319
        $region102: #{tpu_custom_call.1} parent=99 // pred_check_branch
          %2222 = sbr.rel (%p2220) target = $region104
        $region103: #{tpu_custom_call.1} parent=99 // pred_region
          %s2223 = sand.u32 %s304, 1
          %s2224 = scalar_lea.sflag [#allocation4], %s2223
          %s2225 = sand.u32 %s304, 1
          %s2226 = smul.addr %s2225, 8
          %s2227 = scalar_lea.vmem [#allocation14], %s2226
          %2228 = dma.done %s2224, 128
        $region104: #{tpu_custom_call.1} parent=99 // pred_fallthru
          _
      $region100: #{tpu_custom_call.1} parent=5 // pred_fallthru
        _
    $region6: #{tpu_custom_call.1} parent=1 // loop_footer
      %s32 = sadd.s32 1, %s28
    $region7: #{tpu_custom_call.1} parent=1 // loop_footer_branch
      %27 = sbr.rel target = $region3
    $region8: #{tpu_custom_call.1} parent=1 // loop_exit
      _
    %2229 = vsyncpa [#allocation3], 1
    %s2230 = scalar_lea.sflag [#allocation3], 1
    %2231 = vsyncpa %s2230, 1
    %2232 = vsyncpa [#allocation6], 1
    %s2233 = scalar_lea.sflag [#allocation6], 1
    %2234 = vsyncpa %s2233, 1
    %2235 = vsyncpa [#allocation9], 1
    %2236 = vsyncpa [#allocation12], 1
    %2237 = vsyncpa [#allocation4], 1
    %s2238 = scalar_lea.sflag [#allocation4], 1
    %2239 = vsyncpa %s2238, 1

</llo_original>
